<compile_context>
chip_gen: v7x
topology: tpu7x:2x2x1
jax: 0.10.0
libtpu: 0.0.40
codegen_flags: <defaults>
</compile_context>

<pallas_src>
import numpy as np
import jax
import jax.numpy as jnp
from jax.experimental import pallas as pl
from jax.experimental.pallas import tpu as pltpu

HIDDEN = 512
TILE_B_MAX = 256


def _leaky_relu(x, slope=0.2):
    return jnp.where(x > 0, x, slope * x)


def _disc_kernel(x_ref,
                 w1_ref, b1_ref,
                 w2_ref, b2_ref,
                 w3_ref, b3_ref,
                 w4_ref, b4_ref,
                 out_ref):
    """One batch tile of the MLP. Weights are VMEM-resident across grid steps."""
    x = x_ref[...]  # (TILE_B, D) bf16

    # Linear 1 + LeakyReLU(0.2)   (bf16 MXU operands, f32 accumulation)
    h = jnp.dot(x, w1_ref[...], preferred_element_type=jnp.float32) + b1_ref[...]
    h = _leaky_relu(h).astype(jnp.bfloat16)

    # Linear 2 + LeakyReLU(0.2)   (Dropout(0.4) == identity in eval mode)
    h = jnp.dot(h, w2_ref[...], preferred_element_type=jnp.float32) + b2_ref[...]
    h = _leaky_relu(h).astype(jnp.bfloat16)

    # Linear 3 + LeakyReLU(0.2)   (Dropout(0.4) == identity in eval mode)
    h = jnp.dot(h, w3_ref[...], preferred_element_type=jnp.float32) + b3_ref[...]
    h = _leaky_relu(h)  # keep f32 for the final reduction

    # Linear 4 (512 -> 1) on the VPU/XLU as a row-wise reduction (avoids an
    # N=1 MXU matmul and lane-masked stores from the matmul path) + Sigmoid.
    logits = jnp.sum(h * w4_ref[...], axis=-1, keepdims=True) + b4_ref[...]
    out_ref[...] = jax.nn.sigmoid(logits).astype(out_ref.dtype)


def _round_up(x, m):
    return ((x + m - 1) // m) * m


@jax.jit
def discriminator_forward(img, params):
    """img: (B, C, H, W) float32; params: dict of f32 weights/biases.

    Dropout layers run in inference (eval) mode, i.e. identity.
    """
    B = img.shape[0]
    D = int(np.prod(img.shape[1:]))
    flat = img.reshape(B, D)  # row-major flatten == torch .view(B, -1)

    # bf16 activations pack 2 rows/sublane -> pad batch to a multiple of 16;
    # tile the batch with up to TILE_B_MAX rows per grid step.
    tile_b = min(TILE_B_MAX, _round_up(max(B, 1), 16))
    B_pad = _round_up(B, tile_b)
    if B_pad != B:
        flat = jnp.pad(flat, ((0, B_pad - B), (0, 0)))

    # Cast once in the wrapper: bf16 MXU operands, f32 biases / final layer.
    x_bf16 = flat.astype(jnp.bfloat16)
    w1 = params["w1"].astype(jnp.bfloat16)
    w2 = params["w2"].astype(jnp.bfloat16)
    w3 = params["w3"].astype(jnp.bfloat16)
    w4_row = params["w4"].reshape(1, HIDDEN).astype(jnp.float32)   # (1, 512)
    b1 = params["b1"].astype(jnp.float32)
    b2 = params["b2"].astype(jnp.float32)
    b3 = params["b3"].astype(jnp.float32)
    b4 = params["b4"].reshape(1, 1).astype(jnp.float32)

    grid = (B_pad // tile_b,)
    const = lambda i: (0, 0)  # weights / biases: same block every step (resident)

    out = pl.pallas_call(
        _disc_kernel,
        out_shape=jax.ShapeDtypeStruct((B_pad, 1), jnp.float32),
        grid=grid,
        in_specs=[
            pl.BlockSpec((tile_b, D), lambda i: (i, 0)),       # x tile (streamed)
            pl.BlockSpec((D, HIDDEN), const),                  # w1
            pl.BlockSpec((1, HIDDEN), const),                  # b1
            pl.BlockSpec((HIDDEN, HIDDEN), const),             # w2
            pl.BlockSpec((1, HIDDEN), const),                  # b2
            pl.BlockSpec((HIDDEN, HIDDEN), const),             # w3
            pl.BlockSpec((1, HIDDEN), const),                  # b3
            pl.BlockSpec((1, HIDDEN), const),                  # w4 as a row
            pl.BlockSpec((1, 1), const),                       # b4
        ],
        out_specs=pl.BlockSpec((tile_b, 1), lambda i: (i, 0)),
        compiler_params=pltpu.CompilerParams(
            dimension_semantics=("parallel",),      # v7x: shard batch over 2 TCs
            vmem_limit_bytes=48 * 1024 * 1024,      # headroom under v7x 64 MiB/TC
        ),
    )(x_bf16, w1, b1, w2, b2, w3, b3, w4_row, b4)

    return out[:B]


def init_params(key, in_features):
    """Deterministic init mimicking PyTorch nn.Linear default (uniform +-1/sqrt(fan_in)).
    Weights stored (in_features, out_features)."""
    dims = [(in_features, HIDDEN), (HIDDEN, HIDDEN), (HIDDEN, HIDDEN), (HIDDEN, 1)]
    params = {}
    for i, (fin, fout) in enumerate(dims, start=1):
        key, kw, kb = jax.random.split(key, 3)
        bound = 1.0 / np.sqrt(fin)
        params[f"w{i}"] = jax.random.uniform(kw, (fin, fout), jnp.float32, -bound, bound)
        params[f"b{i}"] = jax.random.uniform(kb, (1, fout), jnp.float32, -bound, bound)
    return params


def reference_forward(img, params):
    """Pure-JAX reference mirroring the kernel's numerics (bf16 operands, f32 acc)."""
    B = img.shape[0]
    x = img.reshape(B, -1).astype(jnp.bfloat16)
    w1 = params["w1"].astype(jnp.bfloat16)
    w2 = params["w2"].astype(jnp.bfloat16)
    w3 = params["w3"].astype(jnp.bfloat16)

    h = jnp.dot(x, w1, preferred_element_type=jnp.float32) + params["b1"]
    h = _leaky_relu(h).astype(jnp.bfloat16)
    h = jnp.dot(h, w2, preferred_element_type=jnp.float32) + params["b2"]
    h = _leaky_relu(h).astype(jnp.bfloat16)
    h = jnp.dot(h, w3, preferred_element_type=jnp.float32) + params["b3"]
    h = _leaky_relu(h)
    logits = (jnp.sum(h * params["w4"].reshape(1, HIDDEN), axis=-1, keepdims=True)
              + params["b4"].reshape(1, 1))
    return jax.nn.sigmoid(logits)


if __name__ == "__main__":
    key = jax.random.PRNGKey(0)
    k_img, k_par = jax.random.split(key)

    # Small image shape consistent with the module: img_shape = (1, 16, 16) -> D = 256
    B, C, H, W = 2, 1, 16, 16
    img = jax.random.normal(k_img, (B, C, H, W), jnp.float32)

    params = init_params(k_par, C * H * W)

    out = discriminator_forward(img, params)
    out = jax.block_until_ready(out)

    ref = reference_forward(img, params)
    assert out.shape == (B, 1), out.shape
    np.testing.assert_allclose(np.asarray(out), np.asarray(ref), rtol=2e-3, atol=2e-3)

    print("KERNEL_OK")
</pallas_src>

<mosaic_0001>
module attributes {stable_mosaic.version = 11 : i64} {
  func.func @_disc_kernel(%arg0: i32, %arg1: memref<16x256xbf16, #tpu.memory_space<vmem>>, %arg2: memref<256x512xbf16, #tpu.memory_space<vmem>>, %arg3: memref<1x512xf32, #tpu.memory_space<vmem>>, %arg4: memref<512x512xbf16, #tpu.memory_space<vmem>>, %arg5: memref<1x512xf32, #tpu.memory_space<vmem>>, %arg6: memref<512x512xbf16, #tpu.memory_space<vmem>>, %arg7: memref<1x512xf32, #tpu.memory_space<vmem>>, %arg8: memref<1x512xf32, #tpu.memory_space<vmem>>, %arg9: memref<1x1xf32, #tpu.memory_space<vmem>>, %arg10: memref<16x1xf32, #tpu.memory_space<vmem>>) attributes {dimension_semantics = [#tpu.dimension_semantics<parallel>], iteration_bounds = array<i64: 1>, scalar_prefetch = 0 : i64, scratch_operands = 0 : i64, tpu.core_type = #tpu.core_type<tc>, window_params = [{transform_indices = @transform_0, window_bounds = array<i64: 16, 256>}, {pipeline_mode = #tpu.pipeline_mode<synchronous>, transform_indices = @transform_1, window_bounds = array<i64: 256, 512>}, {pipeline_mode = #tpu.pipeline_mode<synchronous>, transform_indices = @transform_2, window_bounds = array<i64: 1, 512>}, {pipeline_mode = #tpu.pipeline_mode<synchronous>, transform_indices = @transform_3, window_bounds = array<i64: 512, 512>}, {pipeline_mode = #tpu.pipeline_mode<synchronous>, transform_indices = @transform_4, window_bounds = array<i64: 1, 512>}, {pipeline_mode = #tpu.pipeline_mode<synchronous>, transform_indices = @transform_5, window_bounds = array<i64: 512, 512>}, {pipeline_mode = #tpu.pipeline_mode<synchronous>, transform_indices = @transform_6, window_bounds = array<i64: 1, 512>}, {pipeline_mode = #tpu.pipeline_mode<synchronous>, transform_indices = @transform_7, window_bounds = array<i64: 1, 512>}, {pipeline_mode = #tpu.pipeline_mode<synchronous>, transform_indices = @transform_8, window_bounds = array<i64: 1, 1>}, {transform_indices = @transform_9, window_bounds = array<i64: 16, 1>}]} {
    %c0 = arith.constant 0 : index
    %c0_0 = arith.constant 0 : index
    %0 = vector.load %arg1[%c0, %c0_0] : memref<16x256xbf16, #tpu.memory_space<vmem>>, vector<16x256xbf16>
    %c0_1 = arith.constant 0 : index
    %c0_2 = arith.constant 0 : index
    %1 = vector.load %arg2[%c0_1, %c0_2] : memref<256x512xbf16, #tpu.memory_space<vmem>>, vector<256x512xbf16>
    %cst = arith.constant dense<0.000000e+00> : vector<16x512xf32>
    %2 = tpu.matmul %0, %1, %cst {dimension_numbers = #tpu.dot_dimension_numbers<[1], [0], [0], [1], [0, 0, 1, 1], [], []>} : vector<16x256xbf16>, vector<256x512xbf16>, vector<16x512xf32> -> vector<16x512xf32>
    %c0_3 = arith.constant 0 : index
    %c0_4 = arith.constant 0 : index
    %3 = vector.load %arg3[%c0_3, %c0_4] : memref<1x512xf32, #tpu.memory_space<vmem>>, vector<1x512xf32>
    %4 = vector.broadcast %3 : vector<1x512xf32> to vector<16x512xf32>
    %5 = arith.addf %2, %4 : vector<16x512xf32>
    %cst_5 = arith.constant 0.000000e+00 : f32
    %6 = vector.broadcast %cst_5 : f32 to vector<16x512xf32>
    %7 = arith.cmpf ogt, %5, %6 : vector<16x512xf32>
    %cst_6 = arith.constant 2.000000e-01 : f32
    %8 = vector.broadcast %cst_6 : f32 to vector<16x512xf32>
    %9 = arith.mulf %8, %5 : vector<16x512xf32>
    %10 = arith.select %7, %5, %9 : vector<16x512xi1>, vector<16x512xf32>
    %11 = arith.truncf %10 : vector<16x512xf32> to vector<16x512xbf16>
    %c0_7 = arith.constant 0 : index
    %c0_8 = arith.constant 0 : index
    %12 = vector.load %arg4[%c0_7, %c0_8] : memref<512x512xbf16, #tpu.memory_space<vmem>>, vector<512x512xbf16>
    %cst_9 = arith.constant dense<0.000000e+00> : vector<16x512xf32>
    %13 = tpu.matmul %11, %12, %cst_9 {dimension_numbers = #tpu.dot_dimension_numbers<[1], [0], [0], [1], [0, 0, 1, 1], [], []>} : vector<16x512xbf16>, vector<512x512xbf16>, vector<16x512xf32> -> vector<16x512xf32>
    %c0_10 = arith.constant 0 : index
    %c0_11 = arith.constant 0 : index
    %14 = vector.load %arg5[%c0_10, %c0_11] : memref<1x512xf32, #tpu.memory_space<vmem>>, vector<1x512xf32>
    %15 = vector.broadcast %14 : vector<1x512xf32> to vector<16x512xf32>
    %16 = arith.addf %13, %15 : vector<16x512xf32>
    %cst_12 = arith.constant 0.000000e+00 : f32
    %17 = vector.broadcast %cst_12 : f32 to vector<16x512xf32>
    %18 = arith.cmpf ogt, %16, %17 : vector<16x512xf32>
    %cst_13 = arith.constant 2.000000e-01 : f32
    %19 = vector.broadcast %cst_13 : f32 to vector<16x512xf32>
    %20 = arith.mulf %19, %16 : vector<16x512xf32>
    %21 = arith.select %18, %16, %20 : vector<16x512xi1>, vector<16x512xf32>
    %22 = arith.truncf %21 : vector<16x512xf32> to vector<16x512xbf16>
    %c0_14 = arith.constant 0 : index
    %c0_15 = arith.constant 0 : index
    %23 = vector.load %arg6[%c0_14, %c0_15] : memref<512x512xbf16, #tpu.memory_space<vmem>>, vector<512x512xbf16>
    %cst_16 = arith.constant dense<0.000000e+00> : vector<16x512xf32>
    %24 = tpu.matmul %22, %23, %cst_16 {dimension_numbers = #tpu.dot_dimension_numbers<[1], [0], [0], [1], [0, 0, 1, 1], [], []>} : vector<16x512xbf16>, vector<512x512xbf16>, vector<16x512xf32> -> vector<16x512xf32>
    %c0_17 = arith.constant 0 : index
    %c0_18 = arith.constant 0 : index
    %25 = vector.load %arg7[%c0_17, %c0_18] : memref<1x512xf32, #tpu.memory_space<vmem>>, vector<1x512xf32>
    %26 = vector.broadcast %25 : vector<1x512xf32> to vector<16x512xf32>
    %27 = arith.addf %24, %26 : vector<16x512xf32>
    %cst_19 = arith.constant 0.000000e+00 : f32
    %28 = vector.broadcast %cst_19 : f32 to vector<16x512xf32>
    %29 = arith.cmpf ogt, %27, %28 : vector<16x512xf32>
    %cst_20 = arith.constant 2.000000e-01 : f32
    %30 = vector.broadcast %cst_20 : f32 to vector<16x512xf32>
    %31 = arith.mulf %30, %27 : vector<16x512xf32>
    %32 = arith.select %29, %27, %31 : vector<16x512xi1>, vector<16x512xf32>
    %c0_21 = arith.constant 0 : index
    %c0_22 = arith.constant 0 : index
    %33 = vector.load %arg8[%c0_21, %c0_22] : memref<1x512xf32, #tpu.memory_space<vmem>>, vector<1x512xf32>
    %34 = vector.broadcast %33 : vector<1x512xf32> to vector<16x512xf32>
    %35 = arith.mulf %32, %34 : vector<16x512xf32>
    %cst_23 = arith.constant dense<0.000000e+00> : vector<16xf32>
    %36 = vector.multi_reduction <add>, %35, %cst_23 [1] : vector<16x512xf32> to vector<16xf32>
    %37 = vector.shape_cast %36 : vector<16xf32> to vector<16x1xf32>
    %c0_24 = arith.constant 0 : index
    %c0_25 = arith.constant 0 : index
    %38 = vector.load %arg9[%c0_24, %c0_25] : memref<1x1xf32, #tpu.memory_space<vmem>>, vector<1x1xf32>
    %39 = vector.broadcast %38 : vector<1x1xf32> to vector<16x1xf32>
    %40 = arith.addf %37, %39 : vector<16x1xf32>
    %41 = arith.negf %40 : vector<16x1xf32>
    %42 = math.exp %41 : vector<16x1xf32>
    %cst_26 = arith.constant 1.000000e+00 : f32
    %43 = vector.broadcast %cst_26 : f32 to vector<16x1xf32>
    %44 = arith.addf %43, %42 : vector<16x1xf32>
    %45 = arith.divf %43, %44 : vector<16x1xf32>
    %c0_27 = arith.constant 0 : index
    %c0_28 = arith.constant 0 : index
    %46 = vector.load %arg10[%c0_27, %c0_28] : memref<16x1xf32, #tpu.memory_space<vmem>>, vector<16x1xf32>
    tpu.vector_store %arg10[%c0_27, %c0_28], %45 {strides = array<i32>} : memref<16x1xf32, #tpu.memory_space<vmem>>, vector<16x1xf32>,
    return
  }
  func.func @transform_0(%arg0: i32) -> (i32, i32) {
    %c0_i32 = arith.constant 0 : i32
    %c0_i32_0 = arith.constant 0 : i32
    return %arg0, %c0_i32 : i32, i32
  }
  func.func @transform_1(%arg0: i32) -> (i32, i32) {
    %c0_i32 = arith.constant 0 : i32
    %c0_i32_0 = arith.constant 0 : i32
    %c0_i32_1 = arith.constant 0 : i32
    return %c0_i32, %c0_i32_0 : i32, i32
  }
  func.func @transform_2(%arg0: i32) -> (i32, i32) {
    %c0_i32 = arith.constant 0 : i32
    %c0_i32_0 = arith.constant 0 : i32
    %c0_i32_1 = arith.constant 0 : i32
    return %c0_i32, %c0_i32_0 : i32, i32
  }
  func.func @transform_3(%arg0: i32) -> (i32, i32) {
    %c0_i32 = arith.constant 0 : i32
    %c0_i32_0 = arith.constant 0 : i32
    %c0_i32_1 = arith.constant 0 : i32
    return %c0_i32, %c0_i32_0 : i32, i32
  }
  func.func @transform_4(%arg0: i32) -> (i32, i32) {
    %c0_i32 = arith.constant 0 : i32
    %c0_i32_0 = arith.constant 0 : i32
    %c0_i32_1 = arith.constant 0 : i32
    return %c0_i32, %c0_i32_0 : i32, i32
  }
  func.func @transform_5(%arg0: i32) -> (i32, i32) {
    %c0_i32 = arith.constant 0 : i32
    %c0_i32_0 = arith.constant 0 : i32
    %c0_i32_1 = arith.constant 0 : i32
    return %c0_i32, %c0_i32_0 : i32, i32
  }
  func.func @transform_6(%arg0: i32) -> (i32, i32) {
    %c0_i32 = arith.constant 0 : i32
    %c0_i32_0 = arith.constant 0 : i32
    %c0_i32_1 = arith.constant 0 : i32
    return %c0_i32, %c0_i32_0 : i32, i32
  }
  func.func @transform_7(%arg0: i32) -> (i32, i32) {
    %c0_i32 = arith.constant 0 : i32
    %c0_i32_0 = arith.constant 0 : i32
    %c0_i32_1 = arith.constant 0 : i32
    return %c0_i32, %c0_i32_0 : i32, i32
  }
  func.func @transform_8(%arg0: i32) -> (i32, i32) {
    %c0_i32 = arith.constant 0 : i32
    %c0_i32_0 = arith.constant 0 : i32
    %c0_i32_1 = arith.constant 0 : i32
    return %c0_i32, %c0_i32_0 : i32, i32
  }
  func.func @transform_9(%arg0: i32) -> (i32, i32) {
    %c0_i32 = arith.constant 0 : i32
    %c0_i32_0 = arith.constant 0 : i32
    return %arg0, %c0_i32 : i32, i32
  }
}

</mosaic_0001>

<llo_original>
// kernel: discriminator_forward.1
$region0: #{discriminator_forward.1}
  #allocation0 [shape = 'u32[]', space=smem, size = 0x4, offset = 0x4, fixed_abs, tag = 'smem constant byte address 0x4 - core index']
  #allocation1 [shape = 'u32[144,128]{1,0:T(1,128)}', space=vmem, size = 0x12000, scoped, tag = 'internal scratch']
  #allocation2 [shape = 'f32[1,1]{1,0:T(1,128)S(1)}', space=vmem, size = 0x200, scoped, tag = 'scoped memory for discriminator_forward.1']
  %s0 = inlined_call_operand.vmem [shape: bf16[16,256], index: 0, kind: input, shape index: {}]
  %s1 = inlined_call_operand.vmem [shape: bf16[256,512], index: 1, kind: input, shape index: {}]
  %s2 = inlined_call_operand.vmem [shape: f32[1,512], index: 2, kind: input, shape index: {}]
  %s3 = inlined_call_operand.vmem [shape: bf16[512,512], index: 3, kind: input, shape index: {}]
  %s4 = inlined_call_operand.vmem [shape: f32[1,512], index: 4, kind: input, shape index: {}]
  %s5 = inlined_call_operand.vmem [shape: bf16[512,512], index: 5, kind: input, shape index: {}]
  %s6 = inlined_call_operand.vmem [shape: f32[1,512], index: 6, kind: input, shape index: {}]
  %s7 = inlined_call_operand.vmem [shape: f32[1,512], index: 7, kind: input, shape index: {}]
  %s8 = inlined_call_operand.<no memory space> [shape: f32[1,1], index: 8, kind: input, shape index: {}]
  %s9 = inlined_call_operand.vmem [shape: f32[16,1], index: 9, kind: output, shape index: {}]
  %s10 = sld [smem:[#allocation0]]
  $region46: #{discriminator_forward.1} parent=0
    _
  %s12 = ssub.s32 1, %s10
  %s13 = scalar_select 0, %s12, %s10
  %v14 = vstv %s8
  %15 = vst [vmem:[#allocation2] sm:$0x1] %v14
  // Predicated region
  $region2: #{discriminator_forward.1} parent=0 // pred_check
    _
  $region3: #{discriminator_forward.1} parent=0 // pred_check_branch
    %17 = sbr.rel (0) target = $region5
  $region4: #{discriminator_forward.1} parent=0 // pred_region
    _
  $region5: #{discriminator_forward.1} parent=0 // pred_fallthru
    _
  // Predicated region
  $region6: #{discriminator_forward.1} parent=0 // pred_check
    _
  $region7: #{discriminator_forward.1} parent=0 // pred_check_branch
    %19 = sbr.rel (0) target = $region9
  $region8: #{discriminator_forward.1} parent=0 // pred_region
    _
  $region9: #{discriminator_forward.1} parent=0 // pred_fallthru
    _
  // Predicated region
  $region10: #{discriminator_forward.1} parent=0 // pred_check
    _
  $region11: #{discriminator_forward.1} parent=0 // pred_check_branch
    %21 = sbr.rel (0) target = $region13
  $region12: #{discriminator_forward.1} parent=0 // pred_region
    _
  $region13: #{discriminator_forward.1} parent=0 // pred_fallthru
    _
  // Predicated region
  $region14: #{discriminator_forward.1} parent=0 // pred_check
    _
  $region15: #{discriminator_forward.1} parent=0 // pred_check_branch
    %23 = sbr.rel (0) target = $region17
  $region16: #{discriminator_forward.1} parent=0 // pred_region
    _
  $region17: #{discriminator_forward.1} parent=0 // pred_fallthru
    _
  // Predicated region
  $region18: #{discriminator_forward.1} parent=0 // pred_check
    _
  $region19: #{discriminator_forward.1} parent=0 // pred_check_branch
    %25 = sbr.rel (0) target = $region21
  $region20: #{discriminator_forward.1} parent=0 // pred_region
    _
  $region21: #{discriminator_forward.1} parent=0 // pred_fallthru
    _
  // Predicated region
  $region22: #{discriminator_forward.1} parent=0 // pred_check
    _
  $region23: #{discriminator_forward.1} parent=0 // pred_check_branch
    %27 = sbr.rel (0) target = $region25
  $region24: #{discriminator_forward.1} parent=0 // pred_region
    _
  $region25: #{discriminator_forward.1} parent=0 // pred_fallthru
    _
  // Predicated region
  $region26: #{discriminator_forward.1} parent=0 // pred_check
    _
  $region27: #{discriminator_forward.1} parent=0 // pred_check_branch
    %29 = sbr.rel (0) target = $region29
  $region28: #{discriminator_forward.1} parent=0 // pred_region
    _
  $region29: #{discriminator_forward.1} parent=0 // pred_fallthru
    _
  // Predicated region
  $region30: #{discriminator_forward.1} parent=0 // pred_check
    _
  $region31: #{discriminator_forward.1} parent=0 // pred_check_branch
    %31 = sbr.rel (0) target = $region33
  $region32: #{discriminator_forward.1} parent=0 // pred_region
    _
  $region33: #{discriminator_forward.1} parent=0 // pred_fallthru
    _
  // Predicated region
  $region34: #{discriminator_forward.1} parent=0 // pred_check
    _
  $region35: #{discriminator_forward.1} parent=0 // pred_check_branch
    %33 = sbr.rel (0) target = $region37
  $region36: #{discriminator_forward.1} parent=0 // pred_region
    _
  $region37: #{discriminator_forward.1} parent=0 // pred_fallthru
    _
  %v34 = vld [vmem:[%s0] sm:$0xff]
  %v35 = vld [vmem:[%s0 + $0x8] sm:$0xff]
  %v36 = vld [vmem:[%s1] sm:$0xff]
  %v37 = vld [vmem:[%s1 + $0x8] sm:$0xff]
  %v38 = vld [vmem:[%s1 + $0x10] sm:$0xff]
  %v39 = vld [vmem:[%s1 + $0x18] sm:$0xff]
  %v40 = vld [vmem:[%s1 + $0x20] sm:$0xff]
  %v41 = vld [vmem:[%s1 + $0x28] sm:$0xff]
  %v42 = vld [vmem:[%s1 + $0x30] sm:$0xff]
  %v43 = vld [vmem:[%s1 + $0x38] sm:$0xff]
  %v44 = vld [vmem:[%s1 + $0x40] sm:$0xff]
  %v45 = vld [vmem:[%s1 + $0x48] sm:$0xff]
  %v46 = vld [vmem:[%s1 + $0x50] sm:$0xff]
  %v47 = vld [vmem:[%s1 + $0x58] sm:$0xff]
  %v48 = vld [vmem:[%s1 + $0x60] sm:$0xff]
  %v49 = vld [vmem:[%s1 + $0x68] sm:$0xff]
  %v50 = vld [vmem:[%s1 + $0x70] sm:$0xff]
  %v51 = vld [vmem:[%s1 + $0x78] sm:$0xff]
  %v52 = vld [vmem:[%s1 + $0x80] sm:$0xff]
  %v53 = vld [vmem:[%s1 + $0x88] sm:$0xff]
  %v54 = vld [vmem:[%s1 + $0x90] sm:$0xff]
  %v55 = vld [vmem:[%s1 + $0x98] sm:$0xff]
  %v56 = vld [vmem:[%s1 + $0xa0] sm:$0xff]
  %v57 = vld [vmem:[%s1 + $0xa8] sm:$0xff]
  %v58 = vld [vmem:[%s1 + $0xb0] sm:$0xff]
  %v59 = vld [vmem:[%s1 + $0xb8] sm:$0xff]
  %v60 = vld [vmem:[%s1 + $0xc0] sm:$0xff]
  %v61 = vld [vmem:[%s1 + $0xc8] sm:$0xff]
  %v62 = vld [vmem:[%s1 + $0xd0] sm:$0xff]
  %v63 = vld [vmem:[%s1 + $0xd8] sm:$0xff]
  %v64 = vld [vmem:[%s1 + $0xe0] sm:$0xff]
  %v65 = vld [vmem:[%s1 + $0xe8] sm:$0xff]
  %v66 = vld [vmem:[%s1 + $0xf0] sm:$0xff]
  %v67 = vld [vmem:[%s1 + $0xf8] sm:$0xff]
  %v68 = vld [vmem:[%s1 + $0x100] sm:$0xff]
  %v69 = vld [vmem:[%s1 + $0x108] sm:$0xff]
  %v70 = vld [vmem:[%s1 + $0x110] sm:$0xff]
  %v71 = vld [vmem:[%s1 + $0x118] sm:$0xff]
  %v72 = vld [vmem:[%s1 + $0x120] sm:$0xff]
  %v73 = vld [vmem:[%s1 + $0x128] sm:$0xff]
  %v74 = vld [vmem:[%s1 + $0x130] sm:$0xff]
  %v75 = vld [vmem:[%s1 + $0x138] sm:$0xff]
  %v76 = vld [vmem:[%s1 + $0x140] sm:$0xff]
  %v77 = vld [vmem:[%s1 + $0x148] sm:$0xff]
  %v78 = vld [vmem:[%s1 + $0x150] sm:$0xff]
  %v79 = vld [vmem:[%s1 + $0x158] sm:$0xff]
  %v80 = vld [vmem:[%s1 + $0x160] sm:$0xff]
  %v81 = vld [vmem:[%s1 + $0x168] sm:$0xff]
  %v82 = vld [vmem:[%s1 + $0x170] sm:$0xff]
  %v83 = vld [vmem:[%s1 + $0x178] sm:$0xff]
  %v84 = vld [vmem:[%s1 + $0x180] sm:$0xff]
  %v85 = vld [vmem:[%s1 + $0x188] sm:$0xff]
  %v86 = vld [vmem:[%s1 + $0x190] sm:$0xff]
  %v87 = vld [vmem:[%s1 + $0x198] sm:$0xff]
  %v88 = vld [vmem:[%s1 + $0x1a0] sm:$0xff]
  %v89 = vld [vmem:[%s1 + $0x1a8] sm:$0xff]
  %v90 = vld [vmem:[%s1 + $0x1b0] sm:$0xff]
  %v91 = vld [vmem:[%s1 + $0x1b8] sm:$0xff]
  %v92 = vld [vmem:[%s1 + $0x1c0] sm:$0xff]
  %v93 = vld [vmem:[%s1 + $0x1c8] sm:$0xff]
  %v94 = vld [vmem:[%s1 + $0x1d0] sm:$0xff]
  %v95 = vld [vmem:[%s1 + $0x1d8] sm:$0xff]
  %v96 = vld [vmem:[%s1 + $0x1e0] sm:$0xff]
  %v97 = vld [vmem:[%s1 + $0x1e8] sm:$0xff]
  %v98 = vld [vmem:[%s1 + $0x1f0] sm:$0xff]
  %v99 = vld [vmem:[%s1 + $0x1f8] sm:$0xff]
  %v100 = vld [vmem:[%s2] sm:$0xf]
  %v102 = vlaneseq
  %v103 = vshrl.u32 %v102, 7
  %v104 = vsub.s32 0, %v103
  %v105 = vrot.slane %v100, %v104
  %v106 = vlaneseq
  %v107 = vshrl.u32 %v106, 7
  %v108 = vsub.s32 1, %v107
  %v109 = vrot.slane %v100, %v108
  %v110 = vlaneseq
  %v111 = vshrl.u32 %v110, 7
  %v112 = vsub.s32 2, %v111
  %v113 = vrot.slane %v100, %v112
  %v114 = vlaneseq
  %v115 = vshrl.u32 %v114, 7
  %v116 = vsub.s32 3, %v115
  %v117 = vrot.slane %v100, %v116
  %v124 = vunpack.c.l.b16 %v34
  %v125 = vunpack.c.h.b16 %v34
  %v126 = vunpack.c.l.b16 %v35
  %v127 = vunpack.c.h.b16 %v35
  %v128 = vpack.c.b16 %v126, %v124
  %v129 = vpack.c.b16 %v127, %v125
  %v196 = vunpack.c.l.b16 %v36
  %v197 = vunpack.c.h.b16 %v36
  %v198 = vunpack.c.l.b16 %v37
  %v199 = vunpack.c.h.b16 %v37
  %v200 = vunpack.c.l.b16 %v38
  %v201 = vunpack.c.h.b16 %v38
  %v202 = vunpack.c.l.b16 %v39
  %v203 = vunpack.c.h.b16 %v39
  %v204 = vunpack.c.l.b16 %v40
  %v205 = vunpack.c.h.b16 %v40
  %v206 = vunpack.c.l.b16 %v41
  %v207 = vunpack.c.h.b16 %v41
  %v208 = vunpack.c.l.b16 %v42
  %v209 = vunpack.c.h.b16 %v42
  %v210 = vunpack.c.l.b16 %v43
  %v211 = vunpack.c.h.b16 %v43
  %v212 = vunpack.c.l.b16 %v44
  %v213 = vunpack.c.h.b16 %v44
  %v214 = vunpack.c.l.b16 %v45
  %v215 = vunpack.c.h.b16 %v45
  %v216 = vunpack.c.l.b16 %v46
  %v217 = vunpack.c.h.b16 %v46
  %v218 = vunpack.c.l.b16 %v47
  %v219 = vunpack.c.h.b16 %v47
  %v220 = vunpack.c.l.b16 %v48
  %v221 = vunpack.c.h.b16 %v48
  %v222 = vunpack.c.l.b16 %v49
  %v223 = vunpack.c.h.b16 %v49
  %v224 = vunpack.c.l.b16 %v50
  %v225 = vunpack.c.h.b16 %v50
  %v226 = vunpack.c.l.b16 %v51
  %v227 = vunpack.c.h.b16 %v51
  %v228 = vunpack.c.l.b16 %v52
  %v229 = vunpack.c.h.b16 %v52
  %v230 = vunpack.c.l.b16 %v53
  %v231 = vunpack.c.h.b16 %v53
  %v232 = vunpack.c.l.b16 %v54
  %v233 = vunpack.c.h.b16 %v54
  %v234 = vunpack.c.l.b16 %v55
  %v235 = vunpack.c.h.b16 %v55
  %v236 = vunpack.c.l.b16 %v56
  %v237 = vunpack.c.h.b16 %v56
  %v238 = vunpack.c.l.b16 %v57
  %v239 = vunpack.c.h.b16 %v57
  %v240 = vunpack.c.l.b16 %v58
  %v241 = vunpack.c.h.b16 %v58
  %v242 = vunpack.c.l.b16 %v59
  %v243 = vunpack.c.h.b16 %v59
  %v244 = vunpack.c.l.b16 %v60
  %v245 = vunpack.c.h.b16 %v60
  %v246 = vunpack.c.l.b16 %v61
  %v247 = vunpack.c.h.b16 %v61
  %v248 = vunpack.c.l.b16 %v62
  %v249 = vunpack.c.h.b16 %v62
  %v250 = vunpack.c.l.b16 %v63
  %v251 = vunpack.c.h.b16 %v63
  %v252 = vunpack.c.l.b16 %v64
  %v253 = vunpack.c.h.b16 %v64
  %v254 = vunpack.c.l.b16 %v65
  %v255 = vunpack.c.h.b16 %v65
  %v256 = vunpack.c.l.b16 %v66
  %v257 = vunpack.c.h.b16 %v66
  %v258 = vunpack.c.l.b16 %v67
  %v259 = vunpack.c.h.b16 %v67
  %v260 = vunpack.c.l.b16 %v68
  %v261 = vunpack.c.h.b16 %v68
  %v262 = vunpack.c.l.b16 %v69
  %v263 = vunpack.c.h.b16 %v69
  %v264 = vunpack.c.l.b16 %v70
  %v265 = vunpack.c.h.b16 %v70
  %v266 = vunpack.c.l.b16 %v71
  %v267 = vunpack.c.h.b16 %v71
  %v268 = vunpack.c.l.b16 %v72
  %v269 = vunpack.c.h.b16 %v72
  %v270 = vunpack.c.l.b16 %v73
  %v271 = vunpack.c.h.b16 %v73
  %v272 = vunpack.c.l.b16 %v74
  %v273 = vunpack.c.h.b16 %v74
  %v274 = vunpack.c.l.b16 %v75
  %v275 = vunpack.c.h.b16 %v75
  %v276 = vunpack.c.l.b16 %v76
  %v277 = vunpack.c.h.b16 %v76
  %v278 = vunpack.c.l.b16 %v77
  %v279 = vunpack.c.h.b16 %v77
  %v280 = vunpack.c.l.b16 %v78
  %v281 = vunpack.c.h.b16 %v78
  %v282 = vunpack.c.l.b16 %v79
  %v283 = vunpack.c.h.b16 %v79
  %v284 = vunpack.c.l.b16 %v80
  %v285 = vunpack.c.h.b16 %v80
  %v286 = vunpack.c.l.b16 %v81
  %v287 = vunpack.c.h.b16 %v81
  %v288 = vunpack.c.l.b16 %v82
  %v289 = vunpack.c.h.b16 %v82
  %v290 = vunpack.c.l.b16 %v83
  %v291 = vunpack.c.h.b16 %v83
  %v292 = vunpack.c.l.b16 %v84
  %v293 = vunpack.c.h.b16 %v84
  %v294 = vunpack.c.l.b16 %v85
  %v295 = vunpack.c.h.b16 %v85
  %v296 = vunpack.c.l.b16 %v86
  %v297 = vunpack.c.h.b16 %v86
  %v298 = vunpack.c.l.b16 %v87
  %v299 = vunpack.c.h.b16 %v87
  %v300 = vunpack.c.l.b16 %v88
  %v301 = vunpack.c.h.b16 %v88
  %v302 = vunpack.c.l.b16 %v89
  %v303 = vunpack.c.h.b16 %v89
  %v304 = vunpack.c.l.b16 %v90
  %v305 = vunpack.c.h.b16 %v90
  %v306 = vunpack.c.l.b16 %v91
  %v307 = vunpack.c.h.b16 %v91
  %v308 = vunpack.c.l.b16 %v92
  %v309 = vunpack.c.h.b16 %v92
  %v310 = vunpack.c.l.b16 %v93
  %v311 = vunpack.c.h.b16 %v93
  %v312 = vunpack.c.l.b16 %v94
  %v313 = vunpack.c.h.b16 %v94
  %v314 = vunpack.c.l.b16 %v95
  %v315 = vunpack.c.h.b16 %v95
  %v316 = vunpack.c.l.b16 %v96
  %v317 = vunpack.c.h.b16 %v96
  %v318 = vunpack.c.l.b16 %v97
  %v319 = vunpack.c.h.b16 %v97
  %v320 = vunpack.c.l.b16 %v98
  %v321 = vunpack.c.h.b16 %v98
  %v322 = vunpack.c.l.b16 %v99
  %v323 = vunpack.c.h.b16 %v99
  %v324 = vpack.c.b16 %v200, %v196
  %v325 = vpack.c.b16 %v201, %v197
  %v326 = vpack.c.b16 %v202, %v198
  %v327 = vpack.c.b16 %v203, %v199
  %v328 = vpack.c.b16 %v208, %v204
  %v329 = vpack.c.b16 %v209, %v205
  %v330 = vpack.c.b16 %v210, %v206
  %v331 = vpack.c.b16 %v211, %v207
  %v332 = vpack.c.b16 %v216, %v212
  %v333 = vpack.c.b16 %v217, %v213
  %v334 = vpack.c.b16 %v218, %v214
  %v335 = vpack.c.b16 %v219, %v215
  %v336 = vpack.c.b16 %v224, %v220
  %v337 = vpack.c.b16 %v225, %v221
  %v338 = vpack.c.b16 %v226, %v222
  %v339 = vpack.c.b16 %v227, %v223
  %v340 = vpack.c.b16 %v232, %v228
  %v341 = vpack.c.b16 %v233, %v229
  %v342 = vpack.c.b16 %v234, %v230
  %v343 = vpack.c.b16 %v235, %v231
  %v344 = vpack.c.b16 %v240, %v236
  %v345 = vpack.c.b16 %v241, %v237
  %v346 = vpack.c.b16 %v242, %v238
  %v347 = vpack.c.b16 %v243, %v239
  %v348 = vpack.c.b16 %v248, %v244
  %v349 = vpack.c.b16 %v249, %v245
  %v350 = vpack.c.b16 %v250, %v246
  %v351 = vpack.c.b16 %v251, %v247
  %v352 = vpack.c.b16 %v256, %v252
  %v353 = vpack.c.b16 %v257, %v253
  %v354 = vpack.c.b16 %v258, %v254
  %v355 = vpack.c.b16 %v259, %v255
  %v356 = vpack.c.b16 %v264, %v260
  %v357 = vpack.c.b16 %v265, %v261
  %v358 = vpack.c.b16 %v266, %v262
  %v359 = vpack.c.b16 %v267, %v263
  %v360 = vpack.c.b16 %v272, %v268
  %v361 = vpack.c.b16 %v273, %v269
  %v362 = vpack.c.b16 %v274, %v270
  %v363 = vpack.c.b16 %v275, %v271
  %v364 = vpack.c.b16 %v280, %v276
  %v365 = vpack.c.b16 %v281, %v277
  %v366 = vpack.c.b16 %v282, %v278
  %v367 = vpack.c.b16 %v283, %v279
  %v368 = vpack.c.b16 %v288, %v284
  %v369 = vpack.c.b16 %v289, %v285
  %v370 = vpack.c.b16 %v290, %v286
  %v371 = vpack.c.b16 %v291, %v287
  %v372 = vpack.c.b16 %v296, %v292
  %v373 = vpack.c.b16 %v297, %v293
  %v374 = vpack.c.b16 %v298, %v294
  %v375 = vpack.c.b16 %v299, %v295
  %v376 = vpack.c.b16 %v304, %v300
  %v377 = vpack.c.b16 %v305, %v301
  %v378 = vpack.c.b16 %v306, %v302
  %v379 = vpack.c.b16 %v307, %v303
  %v380 = vpack.c.b16 %v312, %v308
  %v381 = vpack.c.b16 %v313, %v309
  %v382 = vpack.c.b16 %v314, %v310
  %v383 = vpack.c.b16 %v315, %v311
  %v384 = vpack.c.b16 %v320, %v316
  %v385 = vpack.c.b16 %v321, %v317
  %v386 = vpack.c.b16 %v322, %v318
  %v387 = vpack.c.b16 %v323, %v319
  %452 = vmatprep.subr.bf16.mxu0 %v325
  %453 = vmatpush1.bf16.msra.mxu0 %v324
  %454 = vmatprep.subr.bf16.mxu0 %v329
  %455 = vmatpush1.bf16.msra.mxu0 %v328
  %456 = vmatprep.subr.bf16.mxu0 %v333
  %457 = vmatpush1.bf16.msra.mxu0 %v332
  %458 = vmatprep.subr.bf16.mxu0 %v337
  %459 = vmatpush1.bf16.msra.mxu0 %v336
  %460 = vmatprep.subr.bf16.mxu0 %v341
  %461 = vmatpush1.bf16.msra.mxu0 %v340
  %462 = vmatprep.subr.bf16.mxu0 %v345
  %463 = vmatpush1.bf16.msra.mxu0 %v344
  %464 = vmatprep.subr.bf16.mxu0 %v349
  %465 = vmatpush1.bf16.msra.mxu0 %v348
  %466 = vmatprep.subr.bf16.mxu0 %v353
  %467 = vmatpush1.bf16.msra.mxu0 %v352
  %468 = vmatprep.subr.bf16.mxu0 %v357
  %469 = vmatpush1.bf16.msra.mxu0 %v356
  %470 = vmatprep.subr.bf16.mxu0 %v361
  %471 = vmatpush1.bf16.msra.mxu0 %v360
  %472 = vmatprep.subr.bf16.mxu0 %v365
  %473 = vmatpush1.bf16.msra.mxu0 %v364
  %474 = vmatprep.subr.bf16.mxu0 %v369
  %475 = vmatpush1.bf16.msra.mxu0 %v368
  %476 = vmatprep.subr.bf16.mxu0 %v373
  %477 = vmatpush1.bf16.msra.mxu0 %v372
  %478 = vmatprep.subr.bf16.mxu0 %v377
  %479 = vmatpush1.bf16.msra.mxu0 %v376
  %480 = vmatprep.subr.bf16.mxu0 %v381
  %481 = vmatpush1.bf16.msra.mxu0 %v380
  %482 = vmatprep.subr.bf16.mxu0 %v385
  %483 = vmatpush1.bf16.msra.mxu0 %v384
  %484 = vmatprep.mubr.bf16.mxu0 %v129
  %485 = vmatmul.mubr.bf16.gmra.mrb[0].mxu0 %v128
  %v486 = vpop.f32.mrb[0].mxu0
  %v487 = vadd.f32 %v105, %v486
  %v488 = vpop.f32.mrb[0].mxu0
  %v489 = vadd.f32 %v109, %v488
  %v490 = vpop.f32.mrb[0].mxu0
  %v491 = vadd.f32 %v105, %v490
  %v492 = vpop.f32.mrb[0].mxu0
  %v493 = vadd.f32 %v109, %v492
  %494 = vdwg.mxu0
  %495 = vmatprep.subr.bf16.mxu0 %v327
  %496 = vmatpush1.bf16.msra.mxu0 %v326
  %497 = vmatprep.subr.bf16.mxu0 %v331
  %498 = vmatpush1.bf16.msra.mxu0 %v330
  %499 = vmatprep.subr.bf16.mxu0 %v335
  %500 = vmatpush1.bf16.msra.mxu0 %v334
  %501 = vmatprep.subr.bf16.mxu0 %v339
  %502 = vmatpush1.bf16.msra.mxu0 %v338
  %503 = vmatprep.subr.bf16.mxu0 %v343
  %504 = vmatpush1.bf16.msra.mxu0 %v342
  %505 = vmatprep.subr.bf16.mxu0 %v347
  %506 = vmatpush1.bf16.msra.mxu0 %v346
  %507 = vmatprep.subr.bf16.mxu0 %v351
  %508 = vmatpush1.bf16.msra.mxu0 %v350
  %509 = vmatprep.subr.bf16.mxu0 %v355
  %510 = vmatpush1.bf16.msra.mxu0 %v354
  %511 = vmatprep.subr.bf16.mxu0 %v359
  %512 = vmatpush1.bf16.msra.mxu0 %v358
  %513 = vmatprep.subr.bf16.mxu0 %v363
  %514 = vmatpush1.bf16.msra.mxu0 %v362
  %515 = vmatprep.subr.bf16.mxu0 %v367
  %516 = vmatpush1.bf16.msra.mxu0 %v366
  %517 = vmatprep.subr.bf16.mxu0 %v371
  %518 = vmatpush1.bf16.msra.mxu0 %v370
  %519 = vmatprep.subr.bf16.mxu0 %v375
  %520 = vmatpush1.bf16.msra.mxu0 %v374
  %521 = vmatprep.subr.bf16.mxu0 %v379
  %522 = vmatpush1.bf16.msra.mxu0 %v378
  %523 = vmatprep.subr.bf16.mxu0 %v383
  %524 = vmatpush1.bf16.msra.mxu0 %v382
  %525 = vmatprep.subr.bf16.mxu0 %v387
  %526 = vmatpush1.bf16.msra.mxu0 %v386
  %527 = vmatprep.mubr.bf16.mxu0 %v129
  %528 = vmatmul.mubr.bf16.gmra.mrb[0].mxu0 %v128
  %v529 = vpop.f32.mrb[0].mxu0
  %v530 = vadd.f32 %v113, %v529
  %v531 = vpop.f32.mrb[0].mxu0
  %v532 = vadd.f32 %v117, %v531
  %v533 = vpop.f32.mrb[0].mxu0
  %v534 = vadd.f32 %v113, %v533
  %v535 = vpop.f32.mrb[0].mxu0
  %v536 = vadd.f32 %v117, %v535
  %537 = vdwg.mxu0
  %vm538 = vcmp.gt.f32.partialorder %v487, 0.0
  %vm539 = vcmp.gt.f32.partialorder %v489, 0.0
  %vm540 = vcmp.gt.f32.partialorder %v530, 0.0
  %vm541 = vcmp.gt.f32.partialorder %v532, 0.0
  %vm542 = vcmp.gt.f32.partialorder %v491, 0.0
  %vm543 = vcmp.gt.f32.partialorder %v493, 0.0
  %vm544 = vcmp.gt.f32.partialorder %v534, 0.0
  %vm545 = vcmp.gt.f32.partialorder %v536, 0.0
  %v546 = vmul.f32 %v487, 0.2
  %v547 = vmul.f32 %v489, 0.2
  %v548 = vmul.f32 %v530, 0.2
  %v549 = vmul.f32 %v532, 0.2
  %v550 = vmul.f32 %v491, 0.2
  %v551 = vmul.f32 %v493, 0.2
  %v552 = vmul.f32 %v534, 0.2
  %v553 = vmul.f32 %v536, 0.2
  %v554 = vsel %vm538, %v487, %v546
  %v555 = vsel %vm539, %v489, %v547
  %v556 = vsel %vm540, %v530, %v548
  %v557 = vsel %vm541, %v532, %v549
  %v558 = vsel %vm542, %v491, %v550
  %v559 = vsel %vm543, %v493, %v551
  %v560 = vsel %vm544, %v534, %v552
  %v561 = vsel %vm545, %v536, %v553
  %v562 = vpack.c.bf16 %v558, %v554
  %v563 = vpack.c.bf16 %v559, %v555
  %v564 = vpack.c.bf16 %v560, %v556
  %v565 = vpack.c.bf16 %v561, %v557
  %v566 = vld [vmem:[%s3] sm:$0xff]
  %v567 = vld [vmem:[%s3 + $0x8] sm:$0xff]
  %v568 = vld [vmem:[%s3 + $0x10] sm:$0xff]
  %v569 = vld [vmem:[%s3 + $0x18] sm:$0xff]
  %v570 = vld [vmem:[%s3 + $0x20] sm:$0xff]
  %v571 = vld [vmem:[%s3 + $0x28] sm:$0xff]
  %v572 = vld [vmem:[%s3 + $0x30] sm:$0xff]
  %v573 = vld [vmem:[%s3 + $0x38] sm:$0xff]
  %v574 = vld [vmem:[%s3 + $0x40] sm:$0xff]
  %v575 = vld [vmem:[%s3 + $0x48] sm:$0xff]
  %v576 = vld [vmem:[%s3 + $0x50] sm:$0xff]
  %v577 = vld [vmem:[%s3 + $0x58] sm:$0xff]
  %v578 = vld [vmem:[%s3 + $0x60] sm:$0xff]
  %v579 = vld [vmem:[%s3 + $0x68] sm:$0xff]
  %v580 = vld [vmem:[%s3 + $0x70] sm:$0xff]
  %v581 = vld [vmem:[%s3 + $0x78] sm:$0xff]
  %v582 = vld [vmem:[%s3 + $0x80] sm:$0xff]
  %v583 = vld [vmem:[%s3 + $0x88] sm:$0xff]
  %v584 = vld [vmem:[%s3 + $0x90] sm:$0xff]
  %v585 = vld [vmem:[%s3 + $0x98] sm:$0xff]
  %v586 = vld [vmem:[%s3 + $0xa0] sm:$0xff]
  %v587 = vld [vmem:[%s3 + $0xa8] sm:$0xff]
  %v588 = vld [vmem:[%s3 + $0xb0] sm:$0xff]
  %v589 = vld [vmem:[%s3 + $0xb8] sm:$0xff]
  %v590 = vld [vmem:[%s3 + $0xc0] sm:$0xff]
  %v591 = vld [vmem:[%s3 + $0xc8] sm:$0xff]
  %v592 = vld [vmem:[%s3 + $0xd0] sm:$0xff]
  %v593 = vld [vmem:[%s3 + $0xd8] sm:$0xff]
  %v594 = vld [vmem:[%s3 + $0xe0] sm:$0xff]
  %v595 = vld [vmem:[%s3 + $0xe8] sm:$0xff]
  %v596 = vld [vmem:[%s3 + $0xf0] sm:$0xff]
  %v597 = vld [vmem:[%s3 + $0xf8] sm:$0xff]
  %v598 = vld [vmem:[%s3 + $0x100] sm:$0xff]
  %v599 = vld [vmem:[%s3 + $0x108] sm:$0xff]
  %v600 = vld [vmem:[%s3 + $0x110] sm:$0xff]
  %v601 = vld [vmem:[%s3 + $0x118] sm:$0xff]
  %v602 = vld [vmem:[%s3 + $0x120] sm:$0xff]
  %v603 = vld [vmem:[%s3 + $0x128] sm:$0xff]
  %v604 = vld [vmem:[%s3 + $0x130] sm:$0xff]
  %v605 = vld [vmem:[%s3 + $0x138] sm:$0xff]
  %v606 = vld [vmem:[%s3 + $0x140] sm:$0xff]
  %v607 = vld [vmem:[%s3 + $0x148] sm:$0xff]
  %v608 = vld [vmem:[%s3 + $0x150] sm:$0xff]
  %v609 = vld [vmem:[%s3 + $0x158] sm:$0xff]
  %v610 = vld [vmem:[%s3 + $0x160] sm:$0xff]
  %v611 = vld [vmem:[%s3 + $0x168] sm:$0xff]
  %v612 = vld [vmem:[%s3 + $0x170] sm:$0xff]
  %v613 = vld [vmem:[%s3 + $0x178] sm:$0xff]
  %v614 = vld [vmem:[%s3 + $0x180] sm:$0xff]
  %v615 = vld [vmem:[%s3 + $0x188] sm:$0xff]
  %v616 = vld [vmem:[%s3 + $0x190] sm:$0xff]
  %v617 = vld [vmem:[%s3 + $0x198] sm:$0xff]
  %v618 = vld [vmem:[%s3 + $0x1a0] sm:$0xff]
  %v619 = vld [vmem:[%s3 + $0x1a8] sm:$0xff]
  %v620 = vld [vmem:[%s3 + $0x1b0] sm:$0xff]
  %v621 = vld [vmem:[%s3 + $0x1b8] sm:$0xff]
  %v622 = vld [vmem:[%s3 + $0x1c0] sm:$0xff]
  %v623 = vld [vmem:[%s3 + $0x1c8] sm:$0xff]
  %v624 = vld [vmem:[%s3 + $0x1d0] sm:$0xff]
  %v625 = vld [vmem:[%s3 + $0x1d8] sm:$0xff]
  %v626 = vld [vmem:[%s3 + $0x1e0] sm:$0xff]
  %v627 = vld [vmem:[%s3 + $0x1e8] sm:$0xff]
  %v628 = vld [vmem:[%s3 + $0x1f0] sm:$0xff]
  %v629 = vld [vmem:[%s3 + $0x1f8] sm:$0xff]
  %v630 = vld [vmem:[%s3 + $0x200] sm:$0xff]
  %v631 = vld [vmem:[%s3 + $0x208] sm:$0xff]
  %v632 = vld [vmem:[%s3 + $0x210] sm:$0xff]
  %v633 = vld [vmem:[%s3 + $0x218] sm:$0xff]
  %v634 = vld [vmem:[%s3 + $0x220] sm:$0xff]
  %v635 = vld [vmem:[%s3 + $0x228] sm:$0xff]
  %v636 = vld [vmem:[%s3 + $0x230] sm:$0xff]
  %v637 = vld [vmem:[%s3 + $0x238] sm:$0xff]
  %v638 = vld [vmem:[%s3 + $0x240] sm:$0xff]
  %v639 = vld [vmem:[%s3 + $0x248] sm:$0xff]
  %v640 = vld [vmem:[%s3 + $0x250] sm:$0xff]
  %v641 = vld [vmem:[%s3 + $0x258] sm:$0xff]
  %v642 = vld [vmem:[%s3 + $0x260] sm:$0xff]
  %v643 = vld [vmem:[%s3 + $0x268] sm:$0xff]
  %v644 = vld [vmem:[%s3 + $0x270] sm:$0xff]
  %v645 = vld [vmem:[%s3 + $0x278] sm:$0xff]
  %v646 = vld [vmem:[%s3 + $0x280] sm:$0xff]
  %v647 = vld [vmem:[%s3 + $0x288] sm:$0xff]
  %v648 = vld [vmem:[%s3 + $0x290] sm:$0xff]
  %v649 = vld [vmem:[%s3 + $0x298] sm:$0xff]
  %v650 = vld [vmem:[%s3 + $0x2a0] sm:$0xff]
  %v651 = vld [vmem:[%s3 + $0x2a8] sm:$0xff]
  %v652 = vld [vmem:[%s3 + $0x2b0] sm:$0xff]
  %v653 = vld [vmem:[%s3 + $0x2b8] sm:$0xff]
  %v654 = vld [vmem:[%s3 + $0x2c0] sm:$0xff]
  %v655 = vld [vmem:[%s3 + $0x2c8] sm:$0xff]
  %v656 = vld [vmem:[%s3 + $0x2d0] sm:$0xff]
  %v657 = vld [vmem:[%s3 + $0x2d8] sm:$0xff]
  %v658 = vld [vmem:[%s3 + $0x2e0] sm:$0xff]
  %v659 = vld [vmem:[%s3 + $0x2e8] sm:$0xff]
  %v660 = vld [vmem:[%s3 + $0x2f0] sm:$0xff]
  %v661 = vld [vmem:[%s3 + $0x2f8] sm:$0xff]
  %v662 = vld [vmem:[%s3 + $0x300] sm:$0xff]
  %v663 = vld [vmem:[%s3 + $0x308] sm:$0xff]
  %v664 = vld [vmem:[%s3 + $0x310] sm:$0xff]
  %v665 = vld [vmem:[%s3 + $0x318] sm:$0xff]
  %v666 = vld [vmem:[%s3 + $0x320] sm:$0xff]
  %v667 = vld [vmem:[%s3 + $0x328] sm:$0xff]
  %v668 = vld [vmem:[%s3 + $0x330] sm:$0xff]
  %v669 = vld [vmem:[%s3 + $0x338] sm:$0xff]
  %v670 = vld [vmem:[%s3 + $0x340] sm:$0xff]
  %v671 = vld [vmem:[%s3 + $0x348] sm:$0xff]
  %v672 = vld [vmem:[%s3 + $0x350] sm:$0xff]
  %v673 = vld [vmem:[%s3 + $0x358] sm:$0xff]
  %v674 = vld [vmem:[%s3 + $0x360] sm:$0xff]
  %v675 = vld [vmem:[%s3 + $0x368] sm:$0xff]
  %v676 = vld [vmem:[%s3 + $0x370] sm:$0xff]
  %v677 = vld [vmem:[%s3 + $0x378] sm:$0xff]
  %v678 = vld [vmem:[%s3 + $0x380] sm:$0xff]
  %v679 = vld [vmem:[%s3 + $0x388] sm:$0xff]
  %v680 = vld [vmem:[%s3 + $0x390] sm:$0xff]
  %v681 = vld [vmem:[%s3 + $0x398] sm:$0xff]
  %v682 = vld [vmem:[%s3 + $0x3a0] sm:$0xff]
  %v683 = vld [vmem:[%s3 + $0x3a8] sm:$0xff]
  %v684 = vld [vmem:[%s3 + $0x3b0] sm:$0xff]
  %v685 = vld [vmem:[%s3 + $0x3b8] sm:$0xff]
  %v686 = vld [vmem:[%s3 + $0x3c0] sm:$0xff]
  %v687 = vld [vmem:[%s3 + $0x3c8] sm:$0xff]
  %v688 = vld [vmem:[%s3 + $0x3d0] sm:$0xff]
  %v689 = vld [vmem:[%s3 + $0x3d8] sm:$0xff]
  %v690 = vld [vmem:[%s3 + $0x3e0] sm:$0xff]
  %v691 = vld [vmem:[%s3 + $0x3e8] sm:$0xff]
  %v692 = vld [vmem:[%s3 + $0x3f0] sm:$0xff]
  %v693 = vld [vmem:[%s3 + $0x3f8] sm:$0xff]
  %v694 = vld [vmem:[%s4] sm:$0xf]
  %v696 = vlaneseq
  %v697 = vshrl.u32 %v696, 7
  %v698 = vsub.s32 0, %v697
  %v699 = vrot.slane %v694, %v698
  %v700 = vlaneseq
  %v701 = vshrl.u32 %v700, 7
  %v702 = vsub.s32 1, %v701
  %v703 = vrot.slane %v694, %v702
  %v704 = vlaneseq
  %v705 = vshrl.u32 %v704, 7
  %v706 = vsub.s32 2, %v705
  %v707 = vrot.slane %v694, %v706
  %v708 = vlaneseq
  %v709 = vshrl.u32 %v708, 7
  %v710 = vsub.s32 3, %v709
  %v711 = vrot.slane %v694, %v710
  %v844 = vunpack.c.l.b16 %v566
  %v845 = vunpack.c.h.b16 %v566
  %v846 = vunpack.c.l.b16 %v567
  %v847 = vunpack.c.h.b16 %v567
  %v848 = vunpack.c.l.b16 %v568
  %v849 = vunpack.c.h.b16 %v568
  %v850 = vunpack.c.l.b16 %v569
  %v851 = vunpack.c.h.b16 %v569
  %v852 = vunpack.c.l.b16 %v570
  %v853 = vunpack.c.h.b16 %v570
  %v854 = vunpack.c.l.b16 %v571
  %v855 = vunpack.c.h.b16 %v571
  %v856 = vunpack.c.l.b16 %v572
  %v857 = vunpack.c.h.b16 %v572
  %v858 = vunpack.c.l.b16 %v573
  %v859 = vunpack.c.h.b16 %v573
  %v860 = vunpack.c.l.b16 %v574
  %v861 = vunpack.c.h.b16 %v574
  %v862 = vunpack.c.l.b16 %v575
  %v863 = vunpack.c.h.b16 %v575
  %v864 = vunpack.c.l.b16 %v576
  %v865 = vunpack.c.h.b16 %v576
  %v866 = vunpack.c.l.b16 %v577
  %v867 = vunpack.c.h.b16 %v577
  %v868 = vunpack.c.l.b16 %v578
  %v869 = vunpack.c.h.b16 %v578
  %v870 = vunpack.c.l.b16 %v579
  %v871 = vunpack.c.h.b16 %v579
  %v872 = vunpack.c.l.b16 %v580
  %v873 = vunpack.c.h.b16 %v580
  %v874 = vunpack.c.l.b16 %v581
  %v875 = vunpack.c.h.b16 %v581
  %v876 = vunpack.c.l.b16 %v582
  %v877 = vunpack.c.h.b16 %v582
  %v878 = vunpack.c.l.b16 %v583
  %v879 = vunpack.c.h.b16 %v583
  %v880 = vunpack.c.l.b16 %v584
  %v881 = vunpack.c.h.b16 %v584
  %v882 = vunpack.c.l.b16 %v585
  %v883 = vunpack.c.h.b16 %v585
  %v884 = vunpack.c.l.b16 %v586
  %v885 = vunpack.c.h.b16 %v586
  %v886 = vunpack.c.l.b16 %v587
  %v887 = vunpack.c.h.b16 %v587
  %v888 = vunpack.c.l.b16 %v588
  %v889 = vunpack.c.h.b16 %v588
  %v890 = vunpack.c.l.b16 %v589
  %v891 = vunpack.c.h.b16 %v589
  %v892 = vunpack.c.l.b16 %v590
  %v893 = vunpack.c.h.b16 %v590
  %v894 = vunpack.c.l.b16 %v591
  %v895 = vunpack.c.h.b16 %v591
  %v896 = vunpack.c.l.b16 %v592
  %v897 = vunpack.c.h.b16 %v592
  %v898 = vunpack.c.l.b16 %v593
  %v899 = vunpack.c.h.b16 %v593
  %v900 = vunpack.c.l.b16 %v594
  %v901 = vunpack.c.h.b16 %v594
  %v902 = vunpack.c.l.b16 %v595
  %v903 = vunpack.c.h.b16 %v595
  %v904 = vunpack.c.l.b16 %v596
  %v905 = vunpack.c.h.b16 %v596
  %v906 = vunpack.c.l.b16 %v597
  %v907 = vunpack.c.h.b16 %v597
  %v908 = vunpack.c.l.b16 %v598
  %v909 = vunpack.c.h.b16 %v598
  %v910 = vunpack.c.l.b16 %v599
  %v911 = vunpack.c.h.b16 %v599
  %v912 = vunpack.c.l.b16 %v600
  %v913 = vunpack.c.h.b16 %v600
  %v914 = vunpack.c.l.b16 %v601
  %v915 = vunpack.c.h.b16 %v601
  %v916 = vunpack.c.l.b16 %v602
  %v917 = vunpack.c.h.b16 %v602
  %v918 = vunpack.c.l.b16 %v603
  %v919 = vunpack.c.h.b16 %v603
  %v920 = vunpack.c.l.b16 %v604
  %v921 = vunpack.c.h.b16 %v604
  %v922 = vunpack.c.l.b16 %v605
  %v923 = vunpack.c.h.b16 %v605
  %v924 = vunpack.c.l.b16 %v606
  %v925 = vunpack.c.h.b16 %v606
  %v926 = vunpack.c.l.b16 %v607
  %v927 = vunpack.c.h.b16 %v607
  %v928 = vunpack.c.l.b16 %v608
  %v929 = vunpack.c.h.b16 %v608
  %v930 = vunpack.c.l.b16 %v609
  %v931 = vunpack.c.h.b16 %v609
  %v932 = vunpack.c.l.b16 %v610
  %v933 = vunpack.c.h.b16 %v610
  %v934 = vunpack.c.l.b16 %v611
  %v935 = vunpack.c.h.b16 %v611
  %v936 = vunpack.c.l.b16 %v612
  %v937 = vunpack.c.h.b16 %v612
  %v938 = vunpack.c.l.b16 %v613
  %v939 = vunpack.c.h.b16 %v613
  %v940 = vunpack.c.l.b16 %v614
  %v941 = vunpack.c.h.b16 %v614
  %v942 = vunpack.c.l.b16 %v615
  %v943 = vunpack.c.h.b16 %v615
  %v944 = vunpack.c.l.b16 %v616
  %v945 = vunpack.c.h.b16 %v616
  %v946 = vunpack.c.l.b16 %v617
  %v947 = vunpack.c.h.b16 %v617
  %v948 = vunpack.c.l.b16 %v618
  %v949 = vunpack.c.h.b16 %v618
  %v950 = vunpack.c.l.b16 %v619
  %v951 = vunpack.c.h.b16 %v619
  %v952 = vunpack.c.l.b16 %v620
  %v953 = vunpack.c.h.b16 %v620
  %v954 = vunpack.c.l.b16 %v621
  %v955 = vunpack.c.h.b16 %v621
  %v956 = vunpack.c.l.b16 %v622
  %v957 = vunpack.c.h.b16 %v622
  %v958 = vunpack.c.l.b16 %v623
  %v959 = vunpack.c.h.b16 %v623
  %v960 = vunpack.c.l.b16 %v624
  %v961 = vunpack.c.h.b16 %v624
  %v962 = vunpack.c.l.b16 %v625
  %v963 = vunpack.c.h.b16 %v625
  %v964 = vunpack.c.l.b16 %v626
  %v965 = vunpack.c.h.b16 %v626
  %v966 = vunpack.c.l.b16 %v627
  %v967 = vunpack.c.h.b16 %v627
  %v968 = vunpack.c.l.b16 %v628
  %v969 = vunpack.c.h.b16 %v628
  %v970 = vunpack.c.l.b16 %v629
  %v971 = vunpack.c.h.b16 %v629
  %v972 = vunpack.c.l.b16 %v630
  %v973 = vunpack.c.h.b16 %v630
  %v974 = vunpack.c.l.b16 %v631
  %v975 = vunpack.c.h.b16 %v631
  %v976 = vunpack.c.l.b16 %v632
  %v977 = vunpack.c.h.b16 %v632
  %v978 = vunpack.c.l.b16 %v633
  %v979 = vunpack.c.h.b16 %v633
  %v980 = vunpack.c.l.b16 %v634
  %v981 = vunpack.c.h.b16 %v634
  %v982 = vunpack.c.l.b16 %v635
  %v983 = vunpack.c.h.b16 %v635
  %v984 = vunpack.c.l.b16 %v636
  %v985 = vunpack.c.h.b16 %v636
  %v986 = vunpack.c.l.b16 %v637
  %v987 = vunpack.c.h.b16 %v637
  %v988 = vunpack.c.l.b16 %v638
  %v989 = vunpack.c.h.b16 %v638
  %v990 = vunpack.c.l.b16 %v639
  %v991 = vunpack.c.h.b16 %v639
  %v992 = vunpack.c.l.b16 %v640
  %v993 = vunpack.c.h.b16 %v640
  %v994 = vunpack.c.l.b16 %v641
  %v995 = vunpack.c.h.b16 %v641
  %v996 = vunpack.c.l.b16 %v642
  %v997 = vunpack.c.h.b16 %v642
  %v998 = vunpack.c.l.b16 %v643
  %v999 = vunpack.c.h.b16 %v643
  %v1000 = vunpack.c.l.b16 %v644
  %v1001 = vunpack.c.h.b16 %v644
  %v1002 = vunpack.c.l.b16 %v645
  %v1003 = vunpack.c.h.b16 %v645
  %v1004 = vunpack.c.l.b16 %v646
  %v1005 = vunpack.c.h.b16 %v646
  %v1006 = vunpack.c.l.b16 %v647
  %v1007 = vunpack.c.h.b16 %v647
  %v1008 = vunpack.c.l.b16 %v648
  %v1009 = vunpack.c.h.b16 %v648
  %v1010 = vunpack.c.l.b16 %v649
  %v1011 = vunpack.c.h.b16 %v649
  %v1012 = vunpack.c.l.b16 %v650
  %v1013 = vunpack.c.h.b16 %v650
  %v1014 = vunpack.c.l.b16 %v651
  %v1015 = vunpack.c.h.b16 %v651
  %v1016 = vunpack.c.l.b16 %v652
  %v1017 = vunpack.c.h.b16 %v652
  %v1018 = vunpack.c.l.b16 %v653
  %v1019 = vunpack.c.h.b16 %v653
  %v1020 = vunpack.c.l.b16 %v654
  %v1021 = vunpack.c.h.b16 %v654
  %v1022 = vunpack.c.l.b16 %v655
  %v1023 = vunpack.c.h.b16 %v655
  %v1024 = vunpack.c.l.b16 %v656
  %v1025 = vunpack.c.h.b16 %v656
  %v1026 = vunpack.c.l.b16 %v657
  %v1027 = vunpack.c.h.b16 %v657
  %v1028 = vunpack.c.l.b16 %v658
  %v1029 = vunpack.c.h.b16 %v658
  %v1030 = vunpack.c.l.b16 %v659
  %v1031 = vunpack.c.h.b16 %v659
  %v1032 = vunpack.c.l.b16 %v660
  %v1033 = vunpack.c.h.b16 %v660
  %v1034 = vunpack.c.l.b16 %v661
  %v1035 = vunpack.c.h.b16 %v661
  %v1036 = vunpack.c.l.b16 %v662
  %v1037 = vunpack.c.h.b16 %v662
  %v1038 = vunpack.c.l.b16 %v663
  %v1039 = vunpack.c.h.b16 %v663
  %v1040 = vunpack.c.l.b16 %v664
  %v1041 = vunpack.c.h.b16 %v664
  %v1042 = vunpack.c.l.b16 %v665
  %v1043 = vunpack.c.h.b16 %v665
  %v1044 = vunpack.c.l.b16 %v666
  %v1045 = vunpack.c.h.b16 %v666
  %v1046 = vunpack.c.l.b16 %v667
  %v1047 = vunpack.c.h.b16 %v667
  %v1048 = vunpack.c.l.b16 %v668
  %v1049 = vunpack.c.h.b16 %v668
  %v1050 = vunpack.c.l.b16 %v669
  %v1051 = vunpack.c.h.b16 %v669
  %v1052 = vunpack.c.l.b16 %v670
  %v1053 = vunpack.c.h.b16 %v670
  %v1054 = vunpack.c.l.b16 %v671
  %v1055 = vunpack.c.h.b16 %v671
  %v1056 = vunpack.c.l.b16 %v672
  %v1057 = vunpack.c.h.b16 %v672
  %v1058 = vunpack.c.l.b16 %v673
  %v1059 = vunpack.c.h.b16 %v673
  %v1060 = vunpack.c.l.b16 %v674
  %v1061 = vunpack.c.h.b16 %v674
  %v1062 = vunpack.c.l.b16 %v675
  %v1063 = vunpack.c.h.b16 %v675
  %v1064 = vunpack.c.l.b16 %v676
  %v1065 = vunpack.c.h.b16 %v676
  %v1066 = vunpack.c.l.b16 %v677
  %v1067 = vunpack.c.h.b16 %v677
  %v1068 = vunpack.c.l.b16 %v678
  %v1069 = vunpack.c.h.b16 %v678
  %v1070 = vunpack.c.l.b16 %v679
  %v1071 = vunpack.c.h.b16 %v679
  %v1072 = vunpack.c.l.b16 %v680
  %v1073 = vunpack.c.h.b16 %v680
  %v1074 = vunpack.c.l.b16 %v681
  %v1075 = vunpack.c.h.b16 %v681
  %v1076 = vunpack.c.l.b16 %v682
  %v1077 = vunpack.c.h.b16 %v682
  %v1078 = vunpack.c.l.b16 %v683
  %v1079 = vunpack.c.h.b16 %v683
  %v1080 = vunpack.c.l.b16 %v684
  %v1081 = vunpack.c.h.b16 %v684
  %v1082 = vunpack.c.l.b16 %v685
  %v1083 = vunpack.c.h.b16 %v685
  %v1084 = vunpack.c.l.b16 %v686
  %v1085 = vunpack.c.h.b16 %v686
  %v1086 = vunpack.c.l.b16 %v687
  %v1087 = vunpack.c.h.b16 %v687
  %v1088 = vunpack.c.l.b16 %v688
  %v1089 = vunpack.c.h.b16 %v688
  %v1090 = vunpack.c.l.b16 %v689
  %v1091 = vunpack.c.h.b16 %v689
  %v1092 = vunpack.c.l.b16 %v690
  %v1093 = vunpack.c.h.b16 %v690
  %v1094 = vunpack.c.l.b16 %v691
  %v1095 = vunpack.c.h.b16 %v691
  %v1096 = vunpack.c.l.b16 %v692
  %v1097 = vunpack.c.h.b16 %v692
  %v1098 = vunpack.c.l.b16 %v693
  %v1099 = vunpack.c.h.b16 %v693
  %v1100 = vpack.c.b16 %v848, %v844
  %v1101 = vpack.c.b16 %v849, %v845
  %v1102 = vpack.c.b16 %v850, %v846
  %v1103 = vpack.c.b16 %v851, %v847
  %v1104 = vpack.c.b16 %v856, %v852
  %v1105 = vpack.c.b16 %v857, %v853
  %v1106 = vpack.c.b16 %v858, %v854
  %v1107 = vpack.c.b16 %v859, %v855
  %v1108 = vpack.c.b16 %v864, %v860
  %v1109 = vpack.c.b16 %v865, %v861
  %v1110 = vpack.c.b16 %v866, %v862
  %v1111 = vpack.c.b16 %v867, %v863
  %v1112 = vpack.c.b16 %v872, %v868
  %v1113 = vpack.c.b16 %v873, %v869
  %v1114 = vpack.c.b16 %v874, %v870
  %v1115 = vpack.c.b16 %v875, %v871
  %v1116 = vpack.c.b16 %v880, %v876
  %v1117 = vpack.c.b16 %v881, %v877
  %v1118 = vpack.c.b16 %v882, %v878
  %v1119 = vpack.c.b16 %v883, %v879
  %v1120 = vpack.c.b16 %v888, %v884
  %v1121 = vpack.c.b16 %v889, %v885
  %v1122 = vpack.c.b16 %v890, %v886
  %v1123 = vpack.c.b16 %v891, %v887
  %v1124 = vpack.c.b16 %v896, %v892
  %v1125 = vpack.c.b16 %v897, %v893
  %v1126 = vpack.c.b16 %v898, %v894
  %v1127 = vpack.c.b16 %v899, %v895
  %v1128 = vpack.c.b16 %v904, %v900
  %v1129 = vpack.c.b16 %v905, %v901
  %v1130 = vpack.c.b16 %v906, %v902
  %v1131 = vpack.c.b16 %v907, %v903
  %v1132 = vpack.c.b16 %v912, %v908
  %v1133 = vpack.c.b16 %v913, %v909
  %v1134 = vpack.c.b16 %v914, %v910
  %v1135 = vpack.c.b16 %v915, %v911
  %v1136 = vpack.c.b16 %v920, %v916
  %v1137 = vpack.c.b16 %v921, %v917
  %v1138 = vpack.c.b16 %v922, %v918
  %v1139 = vpack.c.b16 %v923, %v919
  %v1140 = vpack.c.b16 %v928, %v924
  %v1141 = vpack.c.b16 %v929, %v925
  %v1142 = vpack.c.b16 %v930, %v926
  %v1143 = vpack.c.b16 %v931, %v927
  %v1144 = vpack.c.b16 %v936, %v932
  %v1145 = vpack.c.b16 %v937, %v933
  %v1146 = vpack.c.b16 %v938, %v934
  %v1147 = vpack.c.b16 %v939, %v935
  %v1148 = vpack.c.b16 %v944, %v940
  %v1149 = vpack.c.b16 %v945, %v941
  %v1150 = vpack.c.b16 %v946, %v942
  %v1151 = vpack.c.b16 %v947, %v943
  %v1152 = vpack.c.b16 %v952, %v948
  %v1153 = vpack.c.b16 %v953, %v949
  %v1154 = vpack.c.b16 %v954, %v950
  %v1155 = vpack.c.b16 %v955, %v951
  %v1156 = vpack.c.b16 %v960, %v956
  %v1157 = vpack.c.b16 %v961, %v957
  %v1158 = vpack.c.b16 %v962, %v958
  %v1159 = vpack.c.b16 %v963, %v959
  %v1160 = vpack.c.b16 %v968, %v964
  %v1161 = vpack.c.b16 %v969, %v965
  %v1162 = vpack.c.b16 %v970, %v966
  %v1163 = vpack.c.b16 %v971, %v967
  %v1164 = vpack.c.b16 %v976, %v972
  %v1165 = vpack.c.b16 %v977, %v973
  %v1166 = vpack.c.b16 %v978, %v974
  %v1167 = vpack.c.b16 %v979, %v975
  %v1168 = vpack.c.b16 %v984, %v980
  %v1169 = vpack.c.b16 %v985, %v981
  %v1170 = vpack.c.b16 %v986, %v982
  %v1171 = vpack.c.b16 %v987, %v983
  %v1172 = vpack.c.b16 %v992, %v988
  %v1173 = vpack.c.b16 %v993, %v989
  %v1174 = vpack.c.b16 %v994, %v990
  %v1175 = vpack.c.b16 %v995, %v991
  %v1176 = vpack.c.b16 %v1000, %v996
  %v1177 = vpack.c.b16 %v1001, %v997
  %v1178 = vpack.c.b16 %v1002, %v998
  %v1179 = vpack.c.b16 %v1003, %v999
  %v1180 = vpack.c.b16 %v1008, %v1004
  %v1181 = vpack.c.b16 %v1009, %v1005
  %v1182 = vpack.c.b16 %v1010, %v1006
  %v1183 = vpack.c.b16 %v1011, %v1007
  %v1184 = vpack.c.b16 %v1016, %v1012
  %v1185 = vpack.c.b16 %v1017, %v1013
  %v1186 = vpack.c.b16 %v1018, %v1014
  %v1187 = vpack.c.b16 %v1019, %v1015
  %v1188 = vpack.c.b16 %v1024, %v1020
  %v1189 = vpack.c.b16 %v1025, %v1021
  %v1190 = vpack.c.b16 %v1026, %v1022
  %v1191 = vpack.c.b16 %v1027, %v1023
  %v1192 = vpack.c.b16 %v1032, %v1028
  %v1193 = vpack.c.b16 %v1033, %v1029
  %v1194 = vpack.c.b16 %v1034, %v1030
  %v1195 = vpack.c.b16 %v1035, %v1031
  %v1196 = vpack.c.b16 %v1040, %v1036
  %v1197 = vpack.c.b16 %v1041, %v1037
  %v1198 = vpack.c.b16 %v1042, %v1038
  %v1199 = vpack.c.b16 %v1043, %v1039
  %v1200 = vpack.c.b16 %v1048, %v1044
  %v1201 = vpack.c.b16 %v1049, %v1045
  %v1202 = vpack.c.b16 %v1050, %v1046
  %v1203 = vpack.c.b16 %v1051, %v1047
  %v1204 = vpack.c.b16 %v1056, %v1052
  %v1205 = vpack.c.b16 %v1057, %v1053
  %v1206 = vpack.c.b16 %v1058, %v1054
  %v1207 = vpack.c.b16 %v1059, %v1055
  %v1208 = vpack.c.b16 %v1064, %v1060
  %v1209 = vpack.c.b16 %v1065, %v1061
  %v1210 = vpack.c.b16 %v1066, %v1062
  %v1211 = vpack.c.b16 %v1067, %v1063
  %v1212 = vpack.c.b16 %v1072, %v1068
  %v1213 = vpack.c.b16 %v1073, %v1069
  %v1214 = vpack.c.b16 %v1074, %v1070
  %v1215 = vpack.c.b16 %v1075, %v1071
  %v1216 = vpack.c.b16 %v1080, %v1076
  %v1217 = vpack.c.b16 %v1081, %v1077
  %v1218 = vpack.c.b16 %v1082, %v1078
  %v1219 = vpack.c.b16 %v1083, %v1079
  %v1220 = vpack.c.b16 %v1088, %v1084
  %v1221 = vpack.c.b16 %v1089, %v1085
  %v1222 = vpack.c.b16 %v1090, %v1086
  %v1223 = vpack.c.b16 %v1091, %v1087
  %v1224 = vpack.c.b16 %v1096, %v1092
  %v1225 = vpack.c.b16 %v1097, %v1093
  %v1226 = vpack.c.b16 %v1098, %v1094
  %v1227 = vpack.c.b16 %v1099, %v1095
  %1356 = vmatprep.subr.bf16.mxu0 %v1101
  %1357 = vmatpush1.bf16.msra.mxu0 %v1100
  %1358 = vmatprep.subr.bf16.mxu0 %v1105
  %1359 = vmatpush1.bf16.msra.mxu0 %v1104
  %1360 = vmatprep.subr.bf16.mxu0 %v1109
  %1361 = vmatpush1.bf16.msra.mxu0 %v1108
  %1362 = vmatprep.subr.bf16.mxu0 %v1113
  %1363 = vmatpush1.bf16.msra.mxu0 %v1112
  %1364 = vmatprep.subr.bf16.mxu0 %v1117
  %1365 = vmatpush1.bf16.msra.mxu0 %v1116
  %1366 = vmatprep.subr.bf16.mxu0 %v1121
  %1367 = vmatpush1.bf16.msra.mxu0 %v1120
  %1368 = vmatprep.subr.bf16.mxu0 %v1125
  %1369 = vmatpush1.bf16.msra.mxu0 %v1124
  %1370 = vmatprep.subr.bf16.mxu0 %v1129
  %1371 = vmatpush1.bf16.msra.mxu0 %v1128
  %1372 = vmatprep.subr.bf16.mxu0 %v1133
  %1373 = vmatpush1.bf16.msra.mxu0 %v1132
  %1374 = vmatprep.subr.bf16.mxu0 %v1137
  %1375 = vmatpush1.bf16.msra.mxu0 %v1136
  %1376 = vmatprep.subr.bf16.mxu0 %v1141
  %1377 = vmatpush1.bf16.msra.mxu0 %v1140
  %1378 = vmatprep.subr.bf16.mxu0 %v1145
  %1379 = vmatpush1.bf16.msra.mxu0 %v1144
  %1380 = vmatprep.subr.bf16.mxu0 %v1149
  %1381 = vmatpush1.bf16.msra.mxu0 %v1148
  %1382 = vmatprep.subr.bf16.mxu0 %v1153
  %1383 = vmatpush1.bf16.msra.mxu0 %v1152
  %1384 = vmatprep.subr.bf16.mxu0 %v1157
  %1385 = vmatpush1.bf16.msra.mxu0 %v1156
  %1386 = vmatprep.subr.bf16.mxu0 %v1161
  %1387 = vmatpush1.bf16.msra.mxu0 %v1160
  %1388 = vmatprep.mubr.bf16.mxu0 %v563
  %1389 = vmatmul.mubr.bf16.gmra.mrb[0].mxu0 %v562
  %v1390 = vpop.f32.mrb[0].mxu0
  %v1391 = vadd.f32 %v699, %v1390
  %v1392 = vpop.f32.mrb[0].mxu0
  %v1393 = vadd.f32 %v703, %v1392
  %v1394 = vpop.f32.mrb[0].mxu0
  %v1395 = vadd.f32 %v699, %v1394
  %v1396 = vpop.f32.mrb[0].mxu0
  %v1397 = vadd.f32 %v703, %v1396
  %1398 = vdwg.mxu0
  %1399 = vmatprep.subr.bf16.mxu0 %v1165
  %1400 = vmatpush1.bf16.msra.mxu0 %v1164
  %1401 = vmatprep.subr.bf16.mxu0 %v1169
  %1402 = vmatpush1.bf16.msra.mxu0 %v1168
  %1403 = vmatprep.subr.bf16.mxu0 %v1173
  %1404 = vmatpush1.bf16.msra.mxu0 %v1172
  %1405 = vmatprep.subr.bf16.mxu0 %v1177
  %1406 = vmatpush1.bf16.msra.mxu0 %v1176
  %1407 = vmatprep.subr.bf16.mxu0 %v1181
  %1408 = vmatpush1.bf16.msra.mxu0 %v1180
  %1409 = vmatprep.subr.bf16.mxu0 %v1185
  %1410 = vmatpush1.bf16.msra.mxu0 %v1184
  %1411 = vmatprep.subr.bf16.mxu0 %v1189
  %1412 = vmatpush1.bf16.msra.mxu0 %v1188
  %1413 = vmatprep.subr.bf16.mxu0 %v1193
  %1414 = vmatpush1.bf16.msra.mxu0 %v1192
  %1415 = vmatprep.subr.bf16.mxu0 %v1197
  %1416 = vmatpush1.bf16.msra.mxu0 %v1196
  %1417 = vmatprep.subr.bf16.mxu0 %v1201
  %1418 = vmatpush1.bf16.msra.mxu0 %v1200
  %1419 = vmatprep.subr.bf16.mxu0 %v1205
  %1420 = vmatpush1.bf16.msra.mxu0 %v1204
  %1421 = vmatprep.subr.bf16.mxu0 %v1209
  %1422 = vmatpush1.bf16.msra.mxu0 %v1208
  %1423 = vmatprep.subr.bf16.mxu0 %v1213
  %1424 = vmatpush1.bf16.msra.mxu0 %v1212
  %1425 = vmatprep.subr.bf16.mxu0 %v1217
  %1426 = vmatpush1.bf16.msra.mxu0 %v1216
  %1427 = vmatprep.subr.bf16.mxu0 %v1221
  %1428 = vmatpush1.bf16.msra.mxu0 %v1220
  %1429 = vmatprep.subr.bf16.mxu0 %v1225
  %1430 = vmatpush1.bf16.msra.mxu0 %v1224
  %1431 = vmatprep.mubr.bf16.mxu0 %v565
  %1432 = vmatmul.mubr.bf16.gmra.mrb[0].mxu0 %v564
  %v1433 = vpop.f32.mrb[0].mxu0
  %v1434 = vadd.f32 %v1391, %v1433
  %v1435 = vpop.f32.mrb[0].mxu0
  %v1436 = vadd.f32 %v1393, %v1435
  %v1437 = vpop.f32.mrb[0].mxu0
  %v1438 = vadd.f32 %v1395, %v1437
  %v1439 = vpop.f32.mrb[0].mxu0
  %v1440 = vadd.f32 %v1397, %v1439
  %1441 = vdwg.mxu0
  %1442 = vmatprep.subr.bf16.mxu0 %v1103
  %1443 = vmatpush1.bf16.msra.mxu0 %v1102
  %1444 = vmatprep.subr.bf16.mxu0 %v1107
  %1445 = vmatpush1.bf16.msra.mxu0 %v1106
  %1446 = vmatprep.subr.bf16.mxu0 %v1111
  %1447 = vmatpush1.bf16.msra.mxu0 %v1110
  %1448 = vmatprep.subr.bf16.mxu0 %v1115
  %1449 = vmatpush1.bf16.msra.mxu0 %v1114
  %1450 = vmatprep.subr.bf16.mxu0 %v1119
  %1451 = vmatpush1.bf16.msra.mxu0 %v1118
  %1452 = vmatprep.subr.bf16.mxu0 %v1123
  %1453 = vmatpush1.bf16.msra.mxu0 %v1122
  %1454 = vmatprep.subr.bf16.mxu0 %v1127
  %1455 = vmatpush1.bf16.msra.mxu0 %v1126
  %1456 = vmatprep.subr.bf16.mxu0 %v1131
  %1457 = vmatpush1.bf16.msra.mxu0 %v1130
  %1458 = vmatprep.subr.bf16.mxu0 %v1135
  %1459 = vmatpush1.bf16.msra.mxu0 %v1134
  %1460 = vmatprep.subr.bf16.mxu0 %v1139
  %1461 = vmatpush1.bf16.msra.mxu0 %v1138
  %1462 = vmatprep.subr.bf16.mxu0 %v1143
  %1463 = vmatpush1.bf16.msra.mxu0 %v1142
  %1464 = vmatprep.subr.bf16.mxu0 %v1147
  %1465 = vmatpush1.bf16.msra.mxu0 %v1146
  %1466 = vmatprep.subr.bf16.mxu0 %v1151
  %1467 = vmatpush1.bf16.msra.mxu0 %v1150
  %1468 = vmatprep.subr.bf16.mxu0 %v1155
  %1469 = vmatpush1.bf16.msra.mxu0 %v1154
  %1470 = vmatprep.subr.bf16.mxu0 %v1159
  %1471 = vmatpush1.bf16.msra.mxu0 %v1158
  %1472 = vmatprep.subr.bf16.mxu0 %v1163
  %1473 = vmatpush1.bf16.msra.mxu0 %v1162
  %1474 = vmatprep.mubr.bf16.mxu0 %v563
  %1475 = vmatmul.mubr.bf16.gmra.mrb[0].mxu0 %v562
  %v1476 = vpop.f32.mrb[0].mxu0
  %v1477 = vadd.f32 %v707, %v1476
  %v1478 = vpop.f32.mrb[0].mxu0
  %v1479 = vadd.f32 %v711, %v1478
  %v1480 = vpop.f32.mrb[0].mxu0
  %v1481 = vadd.f32 %v707, %v1480
  %v1482 = vpop.f32.mrb[0].mxu0
  %v1483 = vadd.f32 %v711, %v1482
  %1484 = vdwg.mxu0
  %1485 = vmatprep.subr.bf16.mxu0 %v1167
  %1486 = vmatpush1.bf16.msra.mxu0 %v1166
  %1487 = vmatprep.subr.bf16.mxu0 %v1171
  %1488 = vmatpush1.bf16.msra.mxu0 %v1170
  %1489 = vmatprep.subr.bf16.mxu0 %v1175
  %1490 = vmatpush1.bf16.msra.mxu0 %v1174
  %1491 = vmatprep.subr.bf16.mxu0 %v1179
  %1492 = vmatpush1.bf16.msra.mxu0 %v1178
  %1493 = vmatprep.subr.bf16.mxu0 %v1183
  %1494 = vmatpush1.bf16.msra.mxu0 %v1182
  %1495 = vmatprep.subr.bf16.mxu0 %v1187
  %1496 = vmatpush1.bf16.msra.mxu0 %v1186
  %1497 = vmatprep.subr.bf16.mxu0 %v1191
  %1498 = vmatpush1.bf16.msra.mxu0 %v1190
  %1499 = vmatprep.subr.bf16.mxu0 %v1195
  %1500 = vmatpush1.bf16.msra.mxu0 %v1194
  %1501 = vmatprep.subr.bf16.mxu0 %v1199
  %1502 = vmatpush1.bf16.msra.mxu0 %v1198
  %1503 = vmatprep.subr.bf16.mxu0 %v1203
  %1504 = vmatpush1.bf16.msra.mxu0 %v1202
  %1505 = vmatprep.subr.bf16.mxu0 %v1207
  %1506 = vmatpush1.bf16.msra.mxu0 %v1206
  %1507 = vmatprep.subr.bf16.mxu0 %v1211
  %1508 = vmatpush1.bf16.msra.mxu0 %v1210
  %1509 = vmatprep.subr.bf16.mxu0 %v1215
  %1510 = vmatpush1.bf16.msra.mxu0 %v1214
  %1511 = vmatprep.subr.bf16.mxu0 %v1219
  %1512 = vmatpush1.bf16.msra.mxu0 %v1218
  %1513 = vmatprep.subr.bf16.mxu0 %v1223
  %1514 = vmatpush1.bf16.msra.mxu0 %v1222
  %1515 = vmatprep.subr.bf16.mxu0 %v1227
  %1516 = vmatpush1.bf16.msra.mxu0 %v1226
  %1517 = vmatprep.mubr.bf16.mxu0 %v565
  %1518 = vmatmul.mubr.bf16.gmra.mrb[0].mxu0 %v564
  %v1519 = vpop.f32.mrb[0].mxu0
  %v1520 = vadd.f32 %v1477, %v1519
  %v1521 = vpop.f32.mrb[0].mxu0
  %v1522 = vadd.f32 %v1479, %v1521
  %v1523 = vpop.f32.mrb[0].mxu0
  %v1524 = vadd.f32 %v1481, %v1523
  %v1525 = vpop.f32.mrb[0].mxu0
  %v1526 = vadd.f32 %v1483, %v1525
  %1527 = vdwg.mxu0
  %vm1528 = vcmp.gt.f32.partialorder %v1434, 0.0
  %vm1529 = vcmp.gt.f32.partialorder %v1436, 0.0
  %vm1530 = vcmp.gt.f32.partialorder %v1520, 0.0
  %vm1531 = vcmp.gt.f32.partialorder %v1522, 0.0
  %vm1532 = vcmp.gt.f32.partialorder %v1438, 0.0
  %vm1533 = vcmp.gt.f32.partialorder %v1440, 0.0
  %vm1534 = vcmp.gt.f32.partialorder %v1524, 0.0
  %vm1535 = vcmp.gt.f32.partialorder %v1526, 0.0
  %v1536 = vmul.f32 %v1434, 0.2
  %v1537 = vmul.f32 %v1436, 0.2
  %v1538 = vmul.f32 %v1520, 0.2
  %v1539 = vmul.f32 %v1522, 0.2
  %v1540 = vmul.f32 %v1438, 0.2
  %v1541 = vmul.f32 %v1440, 0.2
  %v1542 = vmul.f32 %v1524, 0.2
  %v1543 = vmul.f32 %v1526, 0.2
  %v1544 = vsel %vm1528, %v1434, %v1536
  %v1545 = vsel %vm1529, %v1436, %v1537
  %v1546 = vsel %vm1530, %v1520, %v1538
  %v1547 = vsel %vm1531, %v1522, %v1539
  %v1548 = vsel %vm1532, %v1438, %v1540
  %v1549 = vsel %vm1533, %v1440, %v1541
  %v1550 = vsel %vm1534, %v1524, %v1542
  %v1551 = vsel %vm1535, %v1526, %v1543
  %v1552 = vpack.c.bf16 %v1548, %v1544
  %v1553 = vpack.c.bf16 %v1549, %v1545
  %v1554 = vpack.c.bf16 %v1550, %v1546
  %v1555 = vpack.c.bf16 %v1551, %v1547
  %v1556 = vld [vmem:[%s5] sm:$0xff]
  %v1557 = vld [vmem:[%s5 + $0x8] sm:$0xff]
  %v1558 = vld [vmem:[%s5 + $0x10] sm:$0xff]
  %v1559 = vld [vmem:[%s5 + $0x18] sm:$0xff]
  %v1560 = vld [vmem:[%s5 + $0x20] sm:$0xff]
  %v1561 = vld [vmem:[%s5 + $0x28] sm:$0xff]
  %v1562 = vld [vmem:[%s5 + $0x30] sm:$0xff]
  %v1563 = vld [vmem:[%s5 + $0x38] sm:$0xff]
  %v1564 = vld [vmem:[%s5 + $0x40] sm:$0xff]
  %v1565 = vld [vmem:[%s5 + $0x48] sm:$0xff]
  %v1566 = vld [vmem:[%s5 + $0x50] sm:$0xff]
  %v1567 = vld [vmem:[%s5 + $0x58] sm:$0xff]
  %v1568 = vld [vmem:[%s5 + $0x60] sm:$0xff]
  %v1569 = vld [vmem:[%s5 + $0x68] sm:$0xff]
  %v1570 = vld [vmem:[%s5 + $0x70] sm:$0xff]
  %v1571 = vld [vmem:[%s5 + $0x78] sm:$0xff]
  %v1572 = vld [vmem:[%s5 + $0x80] sm:$0xff]
  %v1573 = vld [vmem:[%s5 + $0x88] sm:$0xff]
  %v1574 = vld [vmem:[%s5 + $0x90] sm:$0xff]
  %v1575 = vld [vmem:[%s5 + $0x98] sm:$0xff]
  %v1576 = vld [vmem:[%s5 + $0xa0] sm:$0xff]
  %v1577 = vld [vmem:[%s5 + $0xa8] sm:$0xff]
  %v1578 = vld [vmem:[%s5 + $0xb0] sm:$0xff]
  %v1579 = vld [vmem:[%s5 + $0xb8] sm:$0xff]
  %v1580 = vld [vmem:[%s5 + $0xc0] sm:$0xff]
  %v1581 = vld [vmem:[%s5 + $0xc8] sm:$0xff]
  %v1582 = vld [vmem:[%s5 + $0xd0] sm:$0xff]
  %v1583 = vld [vmem:[%s5 + $0xd8] sm:$0xff]
  %v1584 = vld [vmem:[%s5 + $0xe0] sm:$0xff]
  %v1585 = vld [vmem:[%s5 + $0xe8] sm:$0xff]
  %v1586 = vld [vmem:[%s5 + $0xf0] sm:$0xff]
  %v1587 = vld [vmem:[%s5 + $0xf8] sm:$0xff]
  %v1588 = vld [vmem:[%s5 + $0x100] sm:$0xff]
  %v1589 = vld [vmem:[%s5 + $0x108] sm:$0xff]
  %v1590 = vld [vmem:[%s5 + $0x110] sm:$0xff]
  %v1591 = vld [vmem:[%s5 + $0x118] sm:$0xff]
  %v1592 = vld [vmem:[%s5 + $0x120] sm:$0xff]
  %v1593 = vld [vmem:[%s5 + $0x128] sm:$0xff]
  %v1594 = vld [vmem:[%s5 + $0x130] sm:$0xff]
  %v1595 = vld [vmem:[%s5 + $0x138] sm:$0xff]
  %v1596 = vld [vmem:[%s5 + $0x140] sm:$0xff]
  %v1597 = vld [vmem:[%s5 + $0x148] sm:$0xff]
  %v1598 = vld [vmem:[%s5 + $0x150] sm:$0xff]
  %v1599 = vld [vmem:[%s5 + $0x158] sm:$0xff]
  %v1600 = vld [vmem:[%s5 + $0x160] sm:$0xff]
  %v1601 = vld [vmem:[%s5 + $0x168] sm:$0xff]
  %v1602 = vld [vmem:[%s5 + $0x170] sm:$0xff]
  %v1603 = vld [vmem:[%s5 + $0x178] sm:$0xff]
  %v1604 = vld [vmem:[%s5 + $0x180] sm:$0xff]
  %v1605 = vld [vmem:[%s5 + $0x188] sm:$0xff]
  %v1606 = vld [vmem:[%s5 + $0x190] sm:$0xff]
  %v1607 = vld [vmem:[%s5 + $0x198] sm:$0xff]
  %v1608 = vld [vmem:[%s5 + $0x1a0] sm:$0xff]
  %v1609 = vld [vmem:[%s5 + $0x1a8] sm:$0xff]
  %v1610 = vld [vmem:[%s5 + $0x1b0] sm:$0xff]
  %v1611 = vld [vmem:[%s5 + $0x1b8] sm:$0xff]
  %v1612 = vld [vmem:[%s5 + $0x1c0] sm:$0xff]
  %v1613 = vld [vmem:[%s5 + $0x1c8] sm:$0xff]
  %v1614 = vld [vmem:[%s5 + $0x1d0] sm:$0xff]
  %v1615 = vld [vmem:[%s5 + $0x1d8] sm:$0xff]
  %v1616 = vld [vmem:[%s5 + $0x1e0] sm:$0xff]
  %v1617 = vld [vmem:[%s5 + $0x1e8] sm:$0xff]
  %v1618 = vld [vmem:[%s5 + $0x1f0] sm:$0xff]
  %v1619 = vld [vmem:[%s5 + $0x1f8] sm:$0xff]
  %v1620 = vld [vmem:[%s5 + $0x200] sm:$0xff]
  %v1621 = vld [vmem:[%s5 + $0x208] sm:$0xff]
  %v1622 = vld [vmem:[%s5 + $0x210] sm:$0xff]
  %v1623 = vld [vmem:[%s5 + $0x218] sm:$0xff]
  %v1624 = vld [vmem:[%s5 + $0x220] sm:$0xff]
  %v1625 = vld [vmem:[%s5 + $0x228] sm:$0xff]
  %v1626 = vld [vmem:[%s5 + $0x230] sm:$0xff]
  %v1627 = vld [vmem:[%s5 + $0x238] sm:$0xff]
  %v1628 = vld [vmem:[%s5 + $0x240] sm:$0xff]
  %v1629 = vld [vmem:[%s5 + $0x248] sm:$0xff]
  %v1630 = vld [vmem:[%s5 + $0x250] sm:$0xff]
  %v1631 = vld [vmem:[%s5 + $0x258] sm:$0xff]
  %v1632 = vld [vmem:[%s5 + $0x260] sm:$0xff]
  %v1633 = vld [vmem:[%s5 + $0x268] sm:$0xff]
  %v1634 = vld [vmem:[%s5 + $0x270] sm:$0xff]
  %v1635 = vld [vmem:[%s5 + $0x278] sm:$0xff]
  %v1636 = vld [vmem:[%s5 + $0x280] sm:$0xff]
  %v1637 = vld [vmem:[%s5 + $0x288] sm:$0xff]
  %v1638 = vld [vmem:[%s5 + $0x290] sm:$0xff]
  %v1639 = vld [vmem:[%s5 + $0x298] sm:$0xff]
  %v1640 = vld [vmem:[%s5 + $0x2a0] sm:$0xff]
  %v1641 = vld [vmem:[%s5 + $0x2a8] sm:$0xff]
  %v1642 = vld [vmem:[%s5 + $0x2b0] sm:$0xff]
  %v1643 = vld [vmem:[%s5 + $0x2b8] sm:$0xff]
  %v1644 = vld [vmem:[%s5 + $0x2c0] sm:$0xff]
  %v1645 = vld [vmem:[%s5 + $0x2c8] sm:$0xff]
  %v1646 = vld [vmem:[%s5 + $0x2d0] sm:$0xff]
  %v1647 = vld [vmem:[%s5 + $0x2d8] sm:$0xff]
  %v1648 = vld [vmem:[%s5 + $0x2e0] sm:$0xff]
  %v1649 = vld [vmem:[%s5 + $0x2e8] sm:$0xff]
  %v1650 = vld [vmem:[%s5 + $0x2f0] sm:$0xff]
  %v1651 = vld [vmem:[%s5 + $0x2f8] sm:$0xff]
  %v1652 = vld [vmem:[%s5 + $0x300] sm:$0xff]
  %v1653 = vld [vmem:[%s5 + $0x308] sm:$0xff]
  %v1654 = vld [vmem:[%s5 + $0x310] sm:$0xff]
  %v1655 = vld [vmem:[%s5 + $0x318] sm:$0xff]
  %v1656 = vld [vmem:[%s5 + $0x320] sm:$0xff]
  %v1657 = vld [vmem:[%s5 + $0x328] sm:$0xff]
  %v1658 = vld [vmem:[%s5 + $0x330] sm:$0xff]
  %v1659 = vld [vmem:[%s5 + $0x338] sm:$0xff]
  %v1660 = vld [vmem:[%s5 + $0x340] sm:$0xff]
  %v1661 = vld [vmem:[%s5 + $0x348] sm:$0xff]
  %v1662 = vld [vmem:[%s5 + $0x350] sm:$0xff]
  %v1663 = vld [vmem:[%s5 + $0x358] sm:$0xff]
  %v1664 = vld [vmem:[%s5 + $0x360] sm:$0xff]
  %v1665 = vld [vmem:[%s5 + $0x368] sm:$0xff]
  %v1666 = vld [vmem:[%s5 + $0x370] sm:$0xff]
  %v1667 = vld [vmem:[%s5 + $0x378] sm:$0xff]
  %v1668 = vld [vmem:[%s5 + $0x380] sm:$0xff]
  %v1669 = vld [vmem:[%s5 + $0x388] sm:$0xff]
  %v1670 = vld [vmem:[%s5 + $0x390] sm:$0xff]
  %v1671 = vld [vmem:[%s5 + $0x398] sm:$0xff]
  %v1672 = vld [vmem:[%s5 + $0x3a0] sm:$0xff]
  %v1673 = vld [vmem:[%s5 + $0x3a8] sm:$0xff]
  %v1674 = vld [vmem:[%s5 + $0x3b0] sm:$0xff]
  %v1675 = vld [vmem:[%s5 + $0x3b8] sm:$0xff]
  %v1676 = vld [vmem:[%s5 + $0x3c0] sm:$0xff]
  %v1677 = vld [vmem:[%s5 + $0x3c8] sm:$0xff]
  %v1678 = vld [vmem:[%s5 + $0x3d0] sm:$0xff]
  %v1679 = vld [vmem:[%s5 + $0x3d8] sm:$0xff]
  %v1680 = vld [vmem:[%s5 + $0x3e0] sm:$0xff]
  %v1681 = vld [vmem:[%s5 + $0x3e8] sm:$0xff]
  %v1682 = vld [vmem:[%s5 + $0x3f0] sm:$0xff]
  %v1683 = vld [vmem:[%s5 + $0x3f8] sm:$0xff]
  %v1684 = vld [vmem:[%s6] sm:$0xf]
  %v1686 = vlaneseq
  %v1687 = vshrl.u32 %v1686, 7
  %v1688 = vsub.s32 0, %v1687
  %v1689 = vrot.slane %v1684, %v1688
  %v1690 = vlaneseq
  %v1691 = vshrl.u32 %v1690, 7
  %v1692 = vsub.s32 1, %v1691
  %v1693 = vrot.slane %v1684, %v1692
  %v1694 = vlaneseq
  %v1695 = vshrl.u32 %v1694, 7
  %v1696 = vsub.s32 2, %v1695
  %v1697 = vrot.slane %v1684, %v1696
  %v1698 = vlaneseq
  %v1699 = vshrl.u32 %v1698, 7
  %v1700 = vsub.s32 3, %v1699
  %v1701 = vrot.slane %v1684, %v1700
  %v1834 = vunpack.c.l.b16 %v1556
  %v1835 = vunpack.c.h.b16 %v1556
  %v1836 = vunpack.c.l.b16 %v1557
  %v1837 = vunpack.c.h.b16 %v1557
  %v1838 = vunpack.c.l.b16 %v1558
  %v1839 = vunpack.c.h.b16 %v1558
  %v1840 = vunpack.c.l.b16 %v1559
  %v1841 = vunpack.c.h.b16 %v1559
  %v1842 = vunpack.c.l.b16 %v1560
  %v1843 = vunpack.c.h.b16 %v1560
  %v1844 = vunpack.c.l.b16 %v1561
  %v1845 = vunpack.c.h.b16 %v1561
  %v1846 = vunpack.c.l.b16 %v1562
  %v1847 = vunpack.c.h.b16 %v1562
  %v1848 = vunpack.c.l.b16 %v1563
  %v1849 = vunpack.c.h.b16 %v1563
  %v1850 = vunpack.c.l.b16 %v1564
  %v1851 = vunpack.c.h.b16 %v1564
  %v1852 = vunpack.c.l.b16 %v1565
  %v1853 = vunpack.c.h.b16 %v1565
  %v1854 = vunpack.c.l.b16 %v1566
  %v1855 = vunpack.c.h.b16 %v1566
  %v1856 = vunpack.c.l.b16 %v1567
  %v1857 = vunpack.c.h.b16 %v1567
  %v1858 = vunpack.c.l.b16 %v1568
  %v1859 = vunpack.c.h.b16 %v1568
  %v1860 = vunpack.c.l.b16 %v1569
  %v1861 = vunpack.c.h.b16 %v1569
  %v1862 = vunpack.c.l.b16 %v1570
  %v1863 = vunpack.c.h.b16 %v1570
  %v1864 = vunpack.c.l.b16 %v1571
  %v1865 = vunpack.c.h.b16 %v1571
  %v1866 = vunpack.c.l.b16 %v1572
  %v1867 = vunpack.c.h.b16 %v1572
  %v1868 = vunpack.c.l.b16 %v1573
  %v1869 = vunpack.c.h.b16 %v1573
  %v1870 = vunpack.c.l.b16 %v1574
  %v1871 = vunpack.c.h.b16 %v1574
  %v1872 = vunpack.c.l.b16 %v1575
  %v1873 = vunpack.c.h.b16 %v1575
  %v1874 = vunpack.c.l.b16 %v1576
  %v1875 = vunpack.c.h.b16 %v1576
  %v1876 = vunpack.c.l.b16 %v1577
  %v1877 = vunpack.c.h.b16 %v1577
  %v1878 = vunpack.c.l.b16 %v1578
  %v1879 = vunpack.c.h.b16 %v1578
  %v1880 = vunpack.c.l.b16 %v1579
  %v1881 = vunpack.c.h.b16 %v1579
  %v1882 = vunpack.c.l.b16 %v1580
  %v1883 = vunpack.c.h.b16 %v1580
  %v1884 = vunpack.c.l.b16 %v1581
  %v1885 = vunpack.c.h.b16 %v1581
  %v1886 = vunpack.c.l.b16 %v1582
  %v1887 = vunpack.c.h.b16 %v1582
  %v1888 = vunpack.c.l.b16 %v1583
  %v1889 = vunpack.c.h.b16 %v1583
  %v1890 = vunpack.c.l.b16 %v1584
  %v1891 = vunpack.c.h.b16 %v1584
  %v1892 = vunpack.c.l.b16 %v1585
  %v1893 = vunpack.c.h.b16 %v1585
  %v1894 = vunpack.c.l.b16 %v1586
  %v1895 = vunpack.c.h.b16 %v1586
  %v1896 = vunpack.c.l.b16 %v1587
  %v1897 = vunpack.c.h.b16 %v1587
  %v1898 = vunpack.c.l.b16 %v1588
  %v1899 = vunpack.c.h.b16 %v1588
  %v1900 = vunpack.c.l.b16 %v1589
  %v1901 = vunpack.c.h.b16 %v1589
  %v1902 = vunpack.c.l.b16 %v1590
  %v1903 = vunpack.c.h.b16 %v1590
  %v1904 = vunpack.c.l.b16 %v1591
  %v1905 = vunpack.c.h.b16 %v1591
  %v1906 = vunpack.c.l.b16 %v1592
  %v1907 = vunpack.c.h.b16 %v1592
  %v1908 = vunpack.c.l.b16 %v1593
  %v1909 = vunpack.c.h.b16 %v1593
  %v1910 = vunpack.c.l.b16 %v1594
  %v1911 = vunpack.c.h.b16 %v1594
  %v1912 = vunpack.c.l.b16 %v1595
  %v1913 = vunpack.c.h.b16 %v1595
  %v1914 = vunpack.c.l.b16 %v1596
  %v1915 = vunpack.c.h.b16 %v1596
  %v1916 = vunpack.c.l.b16 %v1597
  %v1917 = vunpack.c.h.b16 %v1597
  %v1918 = vunpack.c.l.b16 %v1598
  %v1919 = vunpack.c.h.b16 %v1598
  %v1920 = vunpack.c.l.b16 %v1599
  %v1921 = vunpack.c.h.b16 %v1599
  %v1922 = vunpack.c.l.b16 %v1600
  %v1923 = vunpack.c.h.b16 %v1600
  %v1924 = vunpack.c.l.b16 %v1601
  %v1925 = vunpack.c.h.b16 %v1601
  %v1926 = vunpack.c.l.b16 %v1602
  %v1927 = vunpack.c.h.b16 %v1602
  %v1928 = vunpack.c.l.b16 %v1603
  %v1929 = vunpack.c.h.b16 %v1603
  %v1930 = vunpack.c.l.b16 %v1604
  %v1931 = vunpack.c.h.b16 %v1604
  %v1932 = vunpack.c.l.b16 %v1605
  %v1933 = vunpack.c.h.b16 %v1605
  %v1934 = vunpack.c.l.b16 %v1606
  %v1935 = vunpack.c.h.b16 %v1606
  %v1936 = vunpack.c.l.b16 %v1607
  %v1937 = vunpack.c.h.b16 %v1607
  %v1938 = vunpack.c.l.b16 %v1608
  %v1939 = vunpack.c.h.b16 %v1608
  %v1940 = vunpack.c.l.b16 %v1609
  %v1941 = vunpack.c.h.b16 %v1609
  %v1942 = vunpack.c.l.b16 %v1610
  %v1943 = vunpack.c.h.b16 %v1610
  %v1944 = vunpack.c.l.b16 %v1611
  %v1945 = vunpack.c.h.b16 %v1611
  %v1946 = vunpack.c.l.b16 %v1612
  %v1947 = vunpack.c.h.b16 %v1612
  %v1948 = vunpack.c.l.b16 %v1613
  %v1949 = vunpack.c.h.b16 %v1613
  %v1950 = vunpack.c.l.b16 %v1614
  %v1951 = vunpack.c.h.b16 %v1614
  %v1952 = vunpack.c.l.b16 %v1615
  %v1953 = vunpack.c.h.b16 %v1615
  %v1954 = vunpack.c.l.b16 %v1616
  %v1955 = vunpack.c.h.b16 %v1616
  %v1956 = vunpack.c.l.b16 %v1617
  %v1957 = vunpack.c.h.b16 %v1617
  %v1958 = vunpack.c.l.b16 %v1618
  %v1959 = vunpack.c.h.b16 %v1618
  %v1960 = vunpack.c.l.b16 %v1619
  %v1961 = vunpack.c.h.b16 %v1619
  %v1962 = vunpack.c.l.b16 %v1620
  %v1963 = vunpack.c.h.b16 %v1620
  %v1964 = vunpack.c.l.b16 %v1621
  %v1965 = vunpack.c.h.b16 %v1621
  %v1966 = vunpack.c.l.b16 %v1622
  %v1967 = vunpack.c.h.b16 %v1622
  %v1968 = vunpack.c.l.b16 %v1623
  %v1969 = vunpack.c.h.b16 %v1623
  %v1970 = vunpack.c.l.b16 %v1624
  %v1971 = vunpack.c.h.b16 %v1624
  %v1972 = vunpack.c.l.b16 %v1625
  %v1973 = vunpack.c.h.b16 %v1625
  %v1974 = vunpack.c.l.b16 %v1626
  %v1975 = vunpack.c.h.b16 %v1626
  %v1976 = vunpack.c.l.b16 %v1627
  %v1977 = vunpack.c.h.b16 %v1627
  %v1978 = vunpack.c.l.b16 %v1628
  %v1979 = vunpack.c.h.b16 %v1628
  %v1980 = vunpack.c.l.b16 %v1629
  %v1981 = vunpack.c.h.b16 %v1629
  %v1982 = vunpack.c.l.b16 %v1630
  %v1983 = vunpack.c.h.b16 %v1630
  %v1984 = vunpack.c.l.b16 %v1631
  %v1985 = vunpack.c.h.b16 %v1631
  %v1986 = vunpack.c.l.b16 %v1632
  %v1987 = vunpack.c.h.b16 %v1632
  %v1988 = vunpack.c.l.b16 %v1633
  %v1989 = vunpack.c.h.b16 %v1633
  %v1990 = vunpack.c.l.b16 %v1634
  %v1991 = vunpack.c.h.b16 %v1634
  %v1992 = vunpack.c.l.b16 %v1635
  %v1993 = vunpack.c.h.b16 %v1635
  %v1994 = vunpack.c.l.b16 %v1636
  %v1995 = vunpack.c.h.b16 %v1636
  %v1996 = vunpack.c.l.b16 %v1637
  %v1997 = vunpack.c.h.b16 %v1637
  %v1998 = vunpack.c.l.b16 %v1638
  %v1999 = vunpack.c.h.b16 %v1638
  %v2000 = vunpack.c.l.b16 %v1639
  %v2001 = vunpack.c.h.b16 %v1639
  %v2002 = vunpack.c.l.b16 %v1640
  %v2003 = vunpack.c.h.b16 %v1640
  %v2004 = vunpack.c.l.b16 %v1641
  %v2005 = vunpack.c.h.b16 %v1641
  %v2006 = vunpack.c.l.b16 %v1642
  %v2007 = vunpack.c.h.b16 %v1642
  %v2008 = vunpack.c.l.b16 %v1643
  %v2009 = vunpack.c.h.b16 %v1643
  %v2010 = vunpack.c.l.b16 %v1644
  %v2011 = vunpack.c.h.b16 %v1644
  %v2012 = vunpack.c.l.b16 %v1645
  %v2013 = vunpack.c.h.b16 %v1645
  %v2014 = vunpack.c.l.b16 %v1646
  %v2015 = vunpack.c.h.b16 %v1646
  %v2016 = vunpack.c.l.b16 %v1647
  %v2017 = vunpack.c.h.b16 %v1647
  %v2018 = vunpack.c.l.b16 %v1648
  %v2019 = vunpack.c.h.b16 %v1648
  %v2020 = vunpack.c.l.b16 %v1649
  %v2021 = vunpack.c.h.b16 %v1649
  %v2022 = vunpack.c.l.b16 %v1650
  %v2023 = vunpack.c.h.b16 %v1650
  %v2024 = vunpack.c.l.b16 %v1651
  %v2025 = vunpack.c.h.b16 %v1651
  %v2026 = vunpack.c.l.b16 %v1652
  %v2027 = vunpack.c.h.b16 %v1652
  %v2028 = vunpack.c.l.b16 %v1653
  %v2029 = vunpack.c.h.b16 %v1653
  %v2030 = vunpack.c.l.b16 %v1654
  %v2031 = vunpack.c.h.b16 %v1654
  %v2032 = vunpack.c.l.b16 %v1655
  %v2033 = vunpack.c.h.b16 %v1655
  %v2034 = vunpack.c.l.b16 %v1656
  %v2035 = vunpack.c.h.b16 %v1656
  %v2036 = vunpack.c.l.b16 %v1657
  %v2037 = vunpack.c.h.b16 %v1657
  %v2038 = vunpack.c.l.b16 %v1658
  %v2039 = vunpack.c.h.b16 %v1658
  %v2040 = vunpack.c.l.b16 %v1659
  %v2041 = vunpack.c.h.b16 %v1659
  %v2042 = vunpack.c.l.b16 %v1660
  %v2043 = vunpack.c.h.b16 %v1660
  %v2044 = vunpack.c.l.b16 %v1661
  %v2045 = vunpack.c.h.b16 %v1661
  %v2046 = vunpack.c.l.b16 %v1662
  %v2047 = vunpack.c.h.b16 %v1662
  %v2048 = vunpack.c.l.b16 %v1663
  %v2049 = vunpack.c.h.b16 %v1663
  %v2050 = vunpack.c.l.b16 %v1664
  %v2051 = vunpack.c.h.b16 %v1664
  %v2052 = vunpack.c.l.b16 %v1665
  %v2053 = vunpack.c.h.b16 %v1665
  %v2054 = vunpack.c.l.b16 %v1666
  %v2055 = vunpack.c.h.b16 %v1666
  %v2056 = vunpack.c.l.b16 %v1667
  %v2057 = vunpack.c.h.b16 %v1667
  %v2058 = vunpack.c.l.b16 %v1668
  %v2059 = vunpack.c.h.b16 %v1668
  %v2060 = vunpack.c.l.b16 %v1669
  %v2061 = vunpack.c.h.b16 %v1669
  %v2062 = vunpack.c.l.b16 %v1670
  %v2063 = vunpack.c.h.b16 %v1670
  %v2064 = vunpack.c.l.b16 %v1671
  %v2065 = vunpack.c.h.b16 %v1671
  %v2066 = vunpack.c.l.b16 %v1672
  %v2067 = vunpack.c.h.b16 %v1672
  %v2068 = vunpack.c.l.b16 %v1673
  %v2069 = vunpack.c.h.b16 %v1673
  %v2070 = vunpack.c.l.b16 %v1674
  %v2071 = vunpack.c.h.b16 %v1674
  %v2072 = vunpack.c.l.b16 %v1675
  %v2073 = vunpack.c.h.b16 %v1675
  %v2074 = vunpack.c.l.b16 %v1676
  %v2075 = vunpack.c.h.b16 %v1676
  %v2076 = vunpack.c.l.b16 %v1677
  %v2077 = vunpack.c.h.b16 %v1677
  %v2078 = vunpack.c.l.b16 %v1678
  %v2079 = vunpack.c.h.b16 %v1678
  %v2080 = vunpack.c.l.b16 %v1679
  %v2081 = vunpack.c.h.b16 %v1679
  %v2082 = vunpack.c.l.b16 %v1680
  %v2083 = vunpack.c.h.b16 %v1680
  %v2084 = vunpack.c.l.b16 %v1681
  %v2085 = vunpack.c.h.b16 %v1681
  %v2086 = vunpack.c.l.b16 %v1682
  %v2087 = vunpack.c.h.b16 %v1682
  %v2088 = vunpack.c.l.b16 %v1683
  %v2089 = vunpack.c.h.b16 %v1683
  %v2090 = vpack.c.b16 %v1838, %v1834
  %v2091 = vpack.c.b16 %v1839, %v1835
  %v2092 = vpack.c.b16 %v1840, %v1836
  %v2093 = vpack.c.b16 %v1841, %v1837
  %v2094 = vpack.c.b16 %v1846, %v1842
  %v2095 = vpack.c.b16 %v1847, %v1843
  %v2096 = vpack.c.b16 %v1848, %v1844
  %v2097 = vpack.c.b16 %v1849, %v1845
  %v2098 = vpack.c.b16 %v1854, %v1850
  %v2099 = vpack.c.b16 %v1855, %v1851
  %v2100 = vpack.c.b16 %v1856, %v1852
  %v2101 = vpack.c.b16 %v1857, %v1853
  %v2102 = vpack.c.b16 %v1862, %v1858
  %v2103 = vpack.c.b16 %v1863, %v1859
  %v2104 = vpack.c.b16 %v1864, %v1860
  %v2105 = vpack.c.b16 %v1865, %v1861
  %v2106 = vpack.c.b16 %v1870, %v1866
  %v2107 = vpack.c.b16 %v1871, %v1867
  %v2108 = vpack.c.b16 %v1872, %v1868
  %v2109 = vpack.c.b16 %v1873, %v1869
  %v2110 = vpack.c.b16 %v1878, %v1874
  %v2111 = vpack.c.b16 %v1879, %v1875
  %v2112 = vpack.c.b16 %v1880, %v1876
  %v2113 = vpack.c.b16 %v1881, %v1877
  %v2114 = vpack.c.b16 %v1886, %v1882
  %v2115 = vpack.c.b16 %v1887, %v1883
  %v2116 = vpack.c.b16 %v1888, %v1884
  %v2117 = vpack.c.b16 %v1889, %v1885
  %v2118 = vpack.c.b16 %v1894, %v1890
  %v2119 = vpack.c.b16 %v1895, %v1891
  %v2120 = vpack.c.b16 %v1896, %v1892
  %v2121 = vpack.c.b16 %v1897, %v1893
  %v2122 = vpack.c.b16 %v1902, %v1898
  %v2123 = vpack.c.b16 %v1903, %v1899
  %v2124 = vpack.c.b16 %v1904, %v1900
  %v2125 = vpack.c.b16 %v1905, %v1901
  %v2126 = vpack.c.b16 %v1910, %v1906
  %v2127 = vpack.c.b16 %v1911, %v1907
  %v2128 = vpack.c.b16 %v1912, %v1908
  %v2129 = vpack.c.b16 %v1913, %v1909
  %v2130 = vpack.c.b16 %v1918, %v1914
  %v2131 = vpack.c.b16 %v1919, %v1915
  %v2132 = vpack.c.b16 %v1920, %v1916
  %v2133 = vpack.c.b16 %v1921, %v1917
  %v2134 = vpack.c.b16 %v1926, %v1922
  %v2135 = vpack.c.b16 %v1927, %v1923
  %v2136 = vpack.c.b16 %v1928, %v1924
  %v2137 = vpack.c.b16 %v1929, %v1925
  %v2138 = vpack.c.b16 %v1934, %v1930
  %v2139 = vpack.c.b16 %v1935, %v1931
  %v2140 = vpack.c.b16 %v1936, %v1932
  %v2141 = vpack.c.b16 %v1937, %v1933
  %v2142 = vpack.c.b16 %v1942, %v1938
  %v2143 = vpack.c.b16 %v1943, %v1939
  %v2144 = vpack.c.b16 %v1944, %v1940
  %v2145 = vpack.c.b16 %v1945, %v1941
  %v2146 = vpack.c.b16 %v1950, %v1946
  %v2147 = vpack.c.b16 %v1951, %v1947
  %v2148 = vpack.c.b16 %v1952, %v1948
  %v2149 = vpack.c.b16 %v1953, %v1949
  %v2150 = vpack.c.b16 %v1958, %v1954
  %v2151 = vpack.c.b16 %v1959, %v1955
  %v2152 = vpack.c.b16 %v1960, %v1956
  %v2153 = vpack.c.b16 %v1961, %v1957
  %v2154 = vpack.c.b16 %v1966, %v1962
  %v2155 = vpack.c.b16 %v1967, %v1963
  %v2156 = vpack.c.b16 %v1968, %v1964
  %v2157 = vpack.c.b16 %v1969, %v1965
  %v2158 = vpack.c.b16 %v1974, %v1970
  %v2159 = vpack.c.b16 %v1975, %v1971
  %v2160 = vpack.c.b16 %v1976, %v1972
  %v2161 = vpack.c.b16 %v1977, %v1973
  %v2162 = vpack.c.b16 %v1982, %v1978
  %v2163 = vpack.c.b16 %v1983, %v1979
  %v2164 = vpack.c.b16 %v1984, %v1980
  %v2165 = vpack.c.b16 %v1985, %v1981
  %v2166 = vpack.c.b16 %v1990, %v1986
  %v2167 = vpack.c.b16 %v1991, %v1987
  %v2168 = vpack.c.b16 %v1992, %v1988
  %v2169 = vpack.c.b16 %v1993, %v1989
  %v2170 = vpack.c.b16 %v1998, %v1994
  %v2171 = vpack.c.b16 %v1999, %v1995
  %v2172 = vpack.c.b16 %v2000, %v1996
  %v2173 = vpack.c.b16 %v2001, %v1997
  %v2174 = vpack.c.b16 %v2006, %v2002
  %v2175 = vpack.c.b16 %v2007, %v2003
  %v2176 = vpack.c.b16 %v2008, %v2004
  %v2177 = vpack.c.b16 %v2009, %v2005
  %v2178 = vpack.c.b16 %v2014, %v2010
  %v2179 = vpack.c.b16 %v2015, %v2011
  %v2180 = vpack.c.b16 %v2016, %v2012
  %v2181 = vpack.c.b16 %v2017, %v2013
  %v2182 = vpack.c.b16 %v2022, %v2018
  %v2183 = vpack.c.b16 %v2023, %v2019
  %v2184 = vpack.c.b16 %v2024, %v2020
  %v2185 = vpack.c.b16 %v2025, %v2021
  %v2186 = vpack.c.b16 %v2030, %v2026
  %v2187 = vpack.c.b16 %v2031, %v2027
  %v2188 = vpack.c.b16 %v2032, %v2028
  %v2189 = vpack.c.b16 %v2033, %v2029
  %v2190 = vpack.c.b16 %v2038, %v2034
  %v2191 = vpack.c.b16 %v2039, %v2035
  %v2192 = vpack.c.b16 %v2040, %v2036
  %v2193 = vpack.c.b16 %v2041, %v2037
  %v2194 = vpack.c.b16 %v2046, %v2042
  %v2195 = vpack.c.b16 %v2047, %v2043
  %v2196 = vpack.c.b16 %v2048, %v2044
  %v2197 = vpack.c.b16 %v2049, %v2045
  %v2198 = vpack.c.b16 %v2054, %v2050
  %v2199 = vpack.c.b16 %v2055, %v2051
  %v2200 = vpack.c.b16 %v2056, %v2052
  %v2201 = vpack.c.b16 %v2057, %v2053
  %v2202 = vpack.c.b16 %v2062, %v2058
  %v2203 = vpack.c.b16 %v2063, %v2059
  %v2204 = vpack.c.b16 %v2064, %v2060
  %v2205 = vpack.c.b16 %v2065, %v2061
  %v2206 = vpack.c.b16 %v2070, %v2066
  %v2207 = vpack.c.b16 %v2071, %v2067
  %v2208 = vpack.c.b16 %v2072, %v2068
  %v2209 = vpack.c.b16 %v2073, %v2069
  %v2210 = vpack.c.b16 %v2078, %v2074
  %v2211 = vpack.c.b16 %v2079, %v2075
  %v2212 = vpack.c.b16 %v2080, %v2076
  %v2213 = vpack.c.b16 %v2081, %v2077
  %v2214 = vpack.c.b16 %v2086, %v2082
  %v2215 = vpack.c.b16 %v2087, %v2083
  %v2216 = vpack.c.b16 %v2088, %v2084
  %v2217 = vpack.c.b16 %v2089, %v2085
  %2346 = vmatprep.subr.bf16.mxu0 %v2091
  %2347 = vmatpush1.bf16.msra.mxu0 %v2090
  %2348 = vmatprep.subr.bf16.mxu0 %v2095
  %2349 = vmatpush1.bf16.msra.mxu0 %v2094
  %2350 = vmatprep.subr.bf16.mxu0 %v2099
  %2351 = vmatpush1.bf16.msra.mxu0 %v2098
  %2352 = vmatprep.subr.bf16.mxu0 %v2103
  %2353 = vmatpush1.bf16.msra.mxu0 %v2102
  %2354 = vmatprep.subr.bf16.mxu0 %v2107
  %2355 = vmatpush1.bf16.msra.mxu0 %v2106
  %2356 = vmatprep.subr.bf16.mxu0 %v2111
  %2357 = vmatpush1.bf16.msra.mxu0 %v2110
  %2358 = vmatprep.subr.bf16.mxu0 %v2115
  %2359 = vmatpush1.bf16.msra.mxu0 %v2114
  %2360 = vmatprep.subr.bf16.mxu0 %v2119
  %2361 = vmatpush1.bf16.msra.mxu0 %v2118
  %2362 = vmatprep.subr.bf16.mxu0 %v2123
  %2363 = vmatpush1.bf16.msra.mxu0 %v2122
  %2364 = vmatprep.subr.bf16.mxu0 %v2127
  %2365 = vmatpush1.bf16.msra.mxu0 %v2126
  %2366 = vmatprep.subr.bf16.mxu0 %v2131
  %2367 = vmatpush1.bf16.msra.mxu0 %v2130
  %2368 = vmatprep.subr.bf16.mxu0 %v2135
  %2369 = vmatpush1.bf16.msra.mxu0 %v2134
  %2370 = vmatprep.subr.bf16.mxu0 %v2139
  %2371 = vmatpush1.bf16.msra.mxu0 %v2138
  %2372 = vmatprep.subr.bf16.mxu0 %v2143
  %2373 = vmatpush1.bf16.msra.mxu0 %v2142
  %2374 = vmatprep.subr.bf16.mxu0 %v2147
  %2375 = vmatpush1.bf16.msra.mxu0 %v2146
  %2376 = vmatprep.subr.bf16.mxu0 %v2151
  %2377 = vmatpush1.bf16.msra.mxu0 %v2150
  %2378 = vmatprep.mubr.bf16.mxu0 %v1553
  %2379 = vmatmul.mubr.bf16.gmra.mrb[0].mxu0 %v1552
  %v2380 = vpop.f32.mrb[0].mxu0
  %v2381 = vadd.f32 %v1689, %v2380
  %v2382 = vpop.f32.mrb[0].mxu0
  %v2383 = vadd.f32 %v1693, %v2382
  %v2384 = vpop.f32.mrb[0].mxu0
  %v2385 = vadd.f32 %v1689, %v2384
  %v2386 = vpop.f32.mrb[0].mxu0
  %v2387 = vadd.f32 %v1693, %v2386
  %2388 = vdwg.mxu0
  %2389 = vmatprep.subr.bf16.mxu0 %v2155
  %2390 = vmatpush1.bf16.msra.mxu0 %v2154
  %2391 = vmatprep.subr.bf16.mxu0 %v2159
  %2392 = vmatpush1.bf16.msra.mxu0 %v2158
  %2393 = vmatprep.subr.bf16.mxu0 %v2163
  %2394 = vmatpush1.bf16.msra.mxu0 %v2162
  %2395 = vmatprep.subr.bf16.mxu0 %v2167
  %2396 = vmatpush1.bf16.msra.mxu0 %v2166
  %2397 = vmatprep.subr.bf16.mxu0 %v2171
  %2398 = vmatpush1.bf16.msra.mxu0 %v2170
  %2399 = vmatprep.subr.bf16.mxu0 %v2175
  %2400 = vmatpush1.bf16.msra.mxu0 %v2174
  %2401 = vmatprep.subr.bf16.mxu0 %v2179
  %2402 = vmatpush1.bf16.msra.mxu0 %v2178
  %2403 = vmatprep.subr.bf16.mxu0 %v2183
  %2404 = vmatpush1.bf16.msra.mxu0 %v2182
  %2405 = vmatprep.subr.bf16.mxu0 %v2187
  %2406 = vmatpush1.bf16.msra.mxu0 %v2186
  %2407 = vmatprep.subr.bf16.mxu0 %v2191
  %2408 = vmatpush1.bf16.msra.mxu0 %v2190
  %2409 = vmatprep.subr.bf16.mxu0 %v2195
  %2410 = vmatpush1.bf16.msra.mxu0 %v2194
  %2411 = vmatprep.subr.bf16.mxu0 %v2199
  %2412 = vmatpush1.bf16.msra.mxu0 %v2198
  %2413 = vmatprep.subr.bf16.mxu0 %v2203
  %2414 = vmatpush1.bf16.msra.mxu0 %v2202
  %2415 = vmatprep.subr.bf16.mxu0 %v2207
  %2416 = vmatpush1.bf16.msra.mxu0 %v2206
  %2417 = vmatprep.subr.bf16.mxu0 %v2211
  %2418 = vmatpush1.bf16.msra.mxu0 %v2210
  %2419 = vmatprep.subr.bf16.mxu0 %v2215
  %2420 = vmatpush1.bf16.msra.mxu0 %v2214
  %2421 = vmatprep.mubr.bf16.mxu0 %v1555
  %2422 = vmatmul.mubr.bf16.gmra.mrb[0].mxu0 %v1554
  %v2423 = vpop.f32.mrb[0].mxu0
  %v2424 = vadd.f32 %v2381, %v2423
  %v2425 = vpop.f32.mrb[0].mxu0
  %v2426 = vadd.f32 %v2383, %v2425
  %v2427 = vpop.f32.mrb[0].mxu0
  %v2428 = vadd.f32 %v2385, %v2427
  %v2429 = vpop.f32.mrb[0].mxu0
  %v2430 = vadd.f32 %v2387, %v2429
  %2431 = vdwg.mxu0
  %2432 = vmatprep.subr.bf16.mxu0 %v2093
  %2433 = vmatpush1.bf16.msra.mxu0 %v2092
  %2434 = vmatprep.subr.bf16.mxu0 %v2097
  %2435 = vmatpush1.bf16.msra.mxu0 %v2096
  %2436 = vmatprep.subr.bf16.mxu0 %v2101
  %2437 = vmatpush1.bf16.msra.mxu0 %v2100
  %2438 = vmatprep.subr.bf16.mxu0 %v2105
  %2439 = vmatpush1.bf16.msra.mxu0 %v2104
  %2440 = vmatprep.subr.bf16.mxu0 %v2109
  %2441 = vmatpush1.bf16.msra.mxu0 %v2108
  %2442 = vmatprep.subr.bf16.mxu0 %v2113
  %2443 = vmatpush1.bf16.msra.mxu0 %v2112
  %2444 = vmatprep.subr.bf16.mxu0 %v2117
  %2445 = vmatpush1.bf16.msra.mxu0 %v2116
  %2446 = vmatprep.subr.bf16.mxu0 %v2121
  %2447 = vmatpush1.bf16.msra.mxu0 %v2120
  %2448 = vmatprep.subr.bf16.mxu0 %v2125
  %2449 = vmatpush1.bf16.msra.mxu0 %v2124
  %2450 = vmatprep.subr.bf16.mxu0 %v2129
  %2451 = vmatpush1.bf16.msra.mxu0 %v2128
  %2452 = vmatprep.subr.bf16.mxu0 %v2133
  %2453 = vmatpush1.bf16.msra.mxu0 %v2132
  %2454 = vmatprep.subr.bf16.mxu0 %v2137
  %2455 = vmatpush1.bf16.msra.mxu0 %v2136
  %2456 = vmatprep.subr.bf16.mxu0 %v2141
  %2457 = vmatpush1.bf16.msra.mxu0 %v2140
  %2458 = vmatprep.subr.bf16.mxu0 %v2145
  %2459 = vmatpush1.bf16.msra.mxu0 %v2144
  %2460 = vmatprep.subr.bf16.mxu0 %v2149
  %2461 = vmatpush1.bf16.msra.mxu0 %v2148
  %2462 = vmatprep.subr.bf16.mxu0 %v2153
  %2463 = vmatpush1.bf16.msra.mxu0 %v2152
  %2464 = vmatprep.mubr.bf16.mxu0 %v1553
  %2465 = vmatmul.mubr.bf16.gmra.mrb[0].mxu0 %v1552
  %v2466 = vpop.f32.mrb[0].mxu0
  %v2467 = vadd.f32 %v1697, %v2466
  %v2468 = vpop.f32.mrb[0].mxu0
  %v2469 = vadd.f32 %v1701, %v2468
  %v2470 = vpop.f32.mrb[0].mxu0
  %v2471 = vadd.f32 %v1697, %v2470
  %v2472 = vpop.f32.mrb[0].mxu0
  %v2473 = vadd.f32 %v1701, %v2472
  %2474 = vdwg.mxu0
  %2475 = vmatprep.subr.bf16.mxu0 %v2157
  %2476 = vmatpush1.bf16.msra.mxu0 %v2156
  %2477 = vmatprep.subr.bf16.mxu0 %v2161
  %2478 = vmatpush1.bf16.msra.mxu0 %v2160
  %2479 = vmatprep.subr.bf16.mxu0 %v2165
  %2480 = vmatpush1.bf16.msra.mxu0 %v2164
  %2481 = vmatprep.subr.bf16.mxu0 %v2169
  %2482 = vmatpush1.bf16.msra.mxu0 %v2168
  %2483 = vmatprep.subr.bf16.mxu0 %v2173
  %2484 = vmatpush1.bf16.msra.mxu0 %v2172
  %2485 = vmatprep.subr.bf16.mxu0 %v2177
  %2486 = vmatpush1.bf16.msra.mxu0 %v2176
  %2487 = vmatprep.subr.bf16.mxu0 %v2181
  %2488 = vmatpush1.bf16.msra.mxu0 %v2180
  %2489 = vmatprep.subr.bf16.mxu0 %v2185
  %2490 = vmatpush1.bf16.msra.mxu0 %v2184
  %2491 = vmatprep.subr.bf16.mxu0 %v2189
  %2492 = vmatpush1.bf16.msra.mxu0 %v2188
  %2493 = vmatprep.subr.bf16.mxu0 %v2193
  %2494 = vmatpush1.bf16.msra.mxu0 %v2192
  %2495 = vmatprep.subr.bf16.mxu0 %v2197
  %2496 = vmatpush1.bf16.msra.mxu0 %v2196
  %2497 = vmatprep.subr.bf16.mxu0 %v2201
  %2498 = vmatpush1.bf16.msra.mxu0 %v2200
  %2499 = vmatprep.subr.bf16.mxu0 %v2205
  %2500 = vmatpush1.bf16.msra.mxu0 %v2204
  %2501 = vmatprep.subr.bf16.mxu0 %v2209
  %2502 = vmatpush1.bf16.msra.mxu0 %v2208
  %2503 = vmatprep.subr.bf16.mxu0 %v2213
  %2504 = vmatpush1.bf16.msra.mxu0 %v2212
  %2505 = vmatprep.subr.bf16.mxu0 %v2217
  %2506 = vmatpush1.bf16.msra.mxu0 %v2216
  %2507 = vmatprep.mubr.bf16.mxu0 %v1555
  %2508 = vmatmul.mubr.bf16.gmra.mrb[0].mxu0 %v1554
  %v2509 = vpop.f32.mrb[0].mxu0
  %v2510 = vadd.f32 %v2467, %v2509
  %v2511 = vpop.f32.mrb[0].mxu0
  %v2512 = vadd.f32 %v2469, %v2511
  %v2513 = vpop.f32.mrb[0].mxu0
  %v2514 = vadd.f32 %v2471, %v2513
  %v2515 = vpop.f32.mrb[0].mxu0
  %v2516 = vadd.f32 %v2473, %v2515
  %2517 = vdwg.mxu0
  %vm2518 = vcmp.gt.f32.partialorder %v2424, 0.0
  %vm2519 = vcmp.gt.f32.partialorder %v2426, 0.0
  %vm2520 = vcmp.gt.f32.partialorder %v2510, 0.0
  %vm2521 = vcmp.gt.f32.partialorder %v2512, 0.0
  %vm2522 = vcmp.gt.f32.partialorder %v2428, 0.0
  %vm2523 = vcmp.gt.f32.partialorder %v2430, 0.0
  %vm2524 = vcmp.gt.f32.partialorder %v2514, 0.0
  %vm2525 = vcmp.gt.f32.partialorder %v2516, 0.0
  %v2526 = vmul.f32 %v2424, 0.2
  %v2527 = vmul.f32 %v2426, 0.2
  %v2528 = vmul.f32 %v2510, 0.2
  %v2529 = vmul.f32 %v2512, 0.2
  %v2530 = vmul.f32 %v2428, 0.2
  %v2531 = vmul.f32 %v2430, 0.2
  %v2532 = vmul.f32 %v2514, 0.2
  %v2533 = vmul.f32 %v2516, 0.2
  %v2534 = vsel %vm2518, %v2424, %v2526
  %v2535 = vsel %vm2519, %v2426, %v2527
  %v2536 = vsel %vm2520, %v2510, %v2528
  %v2537 = vsel %vm2521, %v2512, %v2529
  %v2538 = vsel %vm2522, %v2428, %v2530
  %v2539 = vsel %vm2523, %v2430, %v2531
  %v2540 = vsel %vm2524, %v2514, %v2532
  %v2541 = vsel %vm2525, %v2516, %v2533
  %v2542 = vld [vmem:[%s7] sm:$0xf]
  %v2544 = vlaneseq
  %v2545 = vshrl.u32 %v2544, 7
  %v2546 = vsub.s32 0, %v2545
  %v2547 = vrot.slane %v2542, %v2546
  %v2548 = vlaneseq
  %v2549 = vshrl.u32 %v2548, 7
  %v2550 = vsub.s32 1, %v2549
  %v2551 = vrot.slane %v2542, %v2550
  %v2552 = vlaneseq
  %v2553 = vshrl.u32 %v2552, 7
  %v2554 = vsub.s32 2, %v2553
  %v2555 = vrot.slane %v2542, %v2554
  %v2556 = vlaneseq
  %v2557 = vshrl.u32 %v2556, 7
  %v2558 = vsub.s32 3, %v2557
  %v2559 = vrot.slane %v2542, %v2558
  %v2564 = vmul.f32 %v2534, %v2547
  %v2565 = vmul.f32 %v2535, %v2551
  %v2566 = vmul.f32 %v2536, %v2555
  %v2567 = vmul.f32 %v2537, %v2559
  %v2568 = vmul.f32 %v2538, %v2547
  %v2569 = vmul.f32 %v2539, %v2551
  %v2570 = vmul.f32 %v2540, %v2555
  %v2571 = vmul.f32 %v2541, %v2559
  %v2572 = vadd.f32 %v2564, %v2565
  %v2573 = vadd.f32 %v2572, %v2566
  %v2574 = vadd.f32 %v2573, %v2567
  %2575 = vadd.xlane.f32.xlu0 %v2574
  %v2576 = vpop.xlane.xlu0 %2575
  %v2577 = vadd.f32 %v2568, %v2569
  %v2578 = vadd.f32 %v2577, %v2570
  %v2579 = vadd.f32 %v2578, %v2571
  %2580 = vadd.xlane.f32.xlu0 %v2579
  %v2581 = vpop.xlane.xlu0 %2580
  %v2582 = vld [vmem:[#allocation2] sm:$0x1]
  %v2584 = vlaneseq
  %v2585 = vshrl.u32 %v2584, 7
  %v2586 = vsub.s32 0, %v2585
  %v2587 = vrot.slane %v2582, %v2586
  %v2589 = vadd.f32 %v2576, %v2587
  %v2590 = vadd.f32 %v2581, %v2587
  %v2591 = vxor.u32 %v2589, 2147483648
  %v2592 = vxor.u32 %v2590, 2147483648
  %v2593 = vmul.f32 %v2591, 1.442695
  %v2594 = vpow.pop %v2593
  %v2595 = vmul.f32 %v2592, 1.442695
  %v2596 = vpow.pop %v2595
  %v2597 = vadd.f32 %v2594, 1.0
  %v2598 = vadd.f32 %v2596, 1.0
  %v2599 = vrcp.pop %v2597
  %v2600 = vmul.f32 1.0, %v2599
  %v2601 = vrcp.pop %v2598
  %v2602 = vmul.f32 1.0, %v2601
  %vm2603 = vcmask 7168
  %2604 = vst.msk [vmem:[%s9] sm:$0xff] %vm2603, %v2600
  %2605 = vst.msk [vmem:[%s9 + $0x8] sm:$0xff] %vm2603, %v2602
  // Predicated region
  $region38: #{discriminator_forward.1} parent=0 // pred_check
    _
  $region39: #{discriminator_forward.1} parent=0 // pred_check_branch
    %2607 = sbr.rel (0) target = $region41
  $region40: #{discriminator_forward.1} parent=0 // pred_region
    _
  $region41: #{discriminator_forward.1} parent=0 // pred_fallthru
    _
  // Predicated region
  $region42: #{discriminator_forward.1} parent=0 // pred_check
    _
  $region43: #{discriminator_forward.1} parent=0 // pred_check_branch
    %2609 = sbr.rel (0) target = $region45
  $region44: #{discriminator_forward.1} parent=0 // pred_region
    _
  $region45: #{discriminator_forward.1} parent=0 // pred_fallthru
    _

</llo_original>
